<compile_context>
chip_gen: v6e
topology: v6e:2x2x1
jax: 0.10.0
libtpu: 0.0.40
codegen_flags: <defaults>
</compile_context>

<pallas_src>
import numpy as np
import jax
import jax.numpy as jnp
from jax.experimental import pallas as pl
from jax.experimental.pallas import tpu as pltpu

_A = -0.75  # PyTorch bicubic coefficient


# ------------------- host-built interpolation matrices (exact PyTorch) -------------------

def _cubic1(t):  # |t| <= 1
    return ((_A + 2.0) * t - (_A + 3.0)) * t * t + 1.0


def _cubic2(t):  # 1 < |t| < 2
    return ((_A * t - 5.0 * _A) * t + 8.0 * _A) * t - 4.0 * _A


def bicubic_matrix(n_in, scale):
    """(n_out, n_in) matrix matching PyTorch bicubic, align_corners=False."""
    n_out = n_in * scale
    m = np.zeros((n_out, n_in), dtype=np.float32)
    for i in range(n_out):
        src = (i + 0.5) / scale - 0.5
        i0 = int(np.floor(src))
        t = src - i0
        w = (_cubic2(t + 1.0), _cubic1(t), _cubic1(1.0 - t), _cubic2(2.0 - t))
        for k in range(4):
            col = min(max(i0 - 1 + k, 0), n_in - 1)   # edge clamping as in PyTorch
            m[i, col] += w[k]
    return m


def bilinear_ac_matrix(n_in, scale):
    """(n_out, n_in) matrix matching PyTorch bilinear, align_corners=True."""
    n_out = n_in * scale
    m = np.zeros((n_out, n_in), dtype=np.float32)
    for i in range(n_out):
        src = 0.0 if n_out == 1 else i * (n_in - 1) / (n_out - 1)
        i0 = min(max(int(np.floor(src)), 0), n_in - 1)
        frac = src - i0
        i1 = min(i0 + 1, n_in - 1)
        m[i, i0] += 1.0 - frac
        m[i, i1] += frac
    return m


# --------------------------- generation-dependent VMEM budgets ---------------------------

def _vmem_budgets():
    """(vmem_limit_bytes, per-step estimate budget) per TPU generation."""
    cap = 0
    try:
        info = pltpu.get_tpu_info()
        for name in ("vmem_capacity_bytes", "vmem_bytes", "vmem_size_bytes"):
            v = getattr(info, name, None)
            if v:
                cap = int(v)
                break
    except Exception:
        cap = 0
    if cap <= 0:
        cap = 64 << 20                      # conservative fallback: v7x per-TC size
    if cap >= (100 << 20):                  # v5e / v6e: 128 MiB physical
        limit = 100 << 20
    else:                                   # v7x: 64 MiB physical per TC
        limit = 48 << 20
    return limit, (limit * 3) // 4


def _vmem_estimate(tb, H, W, Ho, Wo, rt):
    """Bytes live per grid step: double-buffered I/O blocks, weight blocks, temporaries."""
    tbw, tbwo = tb * W, tb * Wo
    inp = 2 * (2 * H * tbw)                         # (2, H, TB*W) input block, x2 buffers
    outp = 2 * (2 * rt * tbwo)                      # (2, RT, TB*Wo) output block, x2 buffers
    wts = 2 * (2 * tbw * tbwo + 2 * rt * H)         # mw/pw + mh/ph blocks, x2 buffers
    live = 4 * H * tbw + 2 * H * tbwo + 4 * rt * tbwo   # re/im/mag/phase, mid, out temps
    return 4 * (inp + outp + wts + live)


def _choose_batch(nc, H, W, Ho, Wo, budget):
    """Images per grid step.  TB=1 when Wo is already lane-dense; otherwise the
    SMALLEST divisor d of nc with (d*Wo) % 128 == 0, preferring an even number of
    grid blocks (v7x has 2 TensorCores), subject to the VMEM estimate budget."""
    if Wo % 128 == 0:
        return 1
    rt_min = 8 if (Ho % 8 == 0 and Ho > 8) else Ho
    lane = [d for d in range(1, nc + 1)
            if nc % d == 0 and (d * Wo) % 128 == 0
            and _vmem_estimate(d, H, W, Ho, Wo, rt_min) <= budget]
    if not lane:
        return 1                                    # masked stores, but correct
    # priority: even G, then G >= 2, then smallest TB
    def rank(d):
        g = nc // d
        return (0 if g % 2 == 0 else (1 if g >= 2 else 2), d)
    return min(lane, key=rank)


def _choose_row_tile(tb, H, W, Ho, Wo, budget):
    """Output-row tile (second grid axis): full Ho if it fits, else the largest
    multiple-of-8 divisor of Ho that fits the VMEM estimate budget."""
    if _vmem_estimate(tb, H, W, Ho, Wo, Ho) <= budget or Ho % 8 != 0:
        return Ho
    cands = [d for d in range(8, Ho, 8) if Ho % d == 0]
    fitting = [d for d in cands if _vmem_estimate(tb, H, W, Ho, Wo, d) <= budget]
    if fitting:
        return max(fitting)
    return min(cands) if cands else Ho


# ----------------------------------- Pallas kernel -----------------------------------

def _upsample_kernel(x_ref, mw_ref, mh_ref, pw_ref, ph_ref, o_ref):
    """One lane-dense slab of TB images, one Ho-row tile.

    x_ref : (1, 2, H, TB*W)        stacked (real, imag)
    mw_ref/pw_ref : (TB*W, TB*Wo)  kron(I_TB, Mw^T) bicubic / bilinear (W interp)
    mh_ref/ph_ref : (RT, H)        row-interp matrices (current Ho-row tile)
    o_ref : (1, 2, RT, TB*Wo)      stacked (real, imag) output
    """
    re = x_ref[0, 0]                                  # (H, TB*W)
    im = x_ref[0, 1] + 1e-10                          # x.imag = x.imag + 1e-10
    mag = jnp.sqrt(re * re + im * im)                 # |x|
    phase = jnp.arctan2(im, re)                       # angle(x)

    # Separable interpolation: two lane-dense 2-D MXU matmuls per field.
    mag_w = jnp.dot(mag, mw_ref[...], preferred_element_type=jnp.float32)     # (H,  TB*Wo)
    ph_w = jnp.dot(phase, pw_ref[...], preferred_element_type=jnp.float32)    # (H,  TB*Wo)
    mag_u = jnp.dot(mh_ref[...], mag_w, preferred_element_type=jnp.float32)   # (RT, TB*Wo)
    ph_u = jnp.dot(ph_ref[...], ph_w, preferred_element_type=jnp.float32)     # (RT, TB*Wo)

    # Recombine on VPU/EUP; stores are unmasked when TB*Wo % 128 == 0.
    o_ref[0, 0] = mag_u * jnp.cos(ph_u)
    o_ref[0, 1] = mag_u * jnp.sin(ph_u)


def _build_call(G, R, TB, RT, H, W, Ho, Wo, vmem_limit):
    TBW, TBWo = TB * W, TB * Wo

    x_spec = pl.BlockSpec((1, 2, H, TBW), lambda g, r: (g, 0, 0, 0))   # constant over r -> no refetch
    w_spec = pl.BlockSpec((TBW, TBWo), lambda g, r: (0, 0))            # constant -> fetched once
    h_spec = pl.BlockSpec((RT, H), lambda g, r: (r, 0))
    o_spec = pl.BlockSpec((1, 2, RT, TBWo), lambda g, r: (g, 0, r, 0))

    cost = pl.CostEstimate(
        flops=int(G * R * 4 * H * TBWo * (TBW + RT)),
        transcendentals=int(G * R * 2 * (H * TBW + RT * TBWo)),
        bytes_accessed=int(4 * (G * 2 * H * TBW + G * 2 * Ho * TBWo
                                + 2 * TBW * TBWo + 2 * Ho * H)),
    )

    return pl.pallas_call(
        _upsample_kernel,
        out_shape=jax.ShapeDtypeStruct((G, 2, Ho, TBWo), jnp.float32),
        grid_spec=pltpu.PrefetchScalarGridSpec(
            num_scalar_prefetch=0,
            grid=(G, R),
            in_specs=[x_spec, w_spec, h_spec, w_spec, h_spec],
            out_specs=o_spec,
        ),
        compiler_params=pltpu.CompilerParams(
            dimension_semantics=("parallel", "parallel"),
            vmem_limit_bytes=int(vmem_limit),
        ),
        cost_estimate=cost,
    )


# ------------------------------------- wrapper -------------------------------------

def complex_upsample(x, scale_factor=2):
    """x: complex64 (N, C, H, W) -> complex64 (N, C, H*s, W*s)."""
    N, C, H, W = x.shape
    s = int(scale_factor)
    Ho, Wo = H * s, W * s
    nc = N * C

    vmem_limit, budget = _vmem_budgets()
    TB = _choose_batch(nc, H, W, Ho, Wo, budget)
    G = nc // TB
    RT = _choose_row_tile(TB, H, W, Ho, Wo, budget)
    R = Ho // RT

    # Interpolation matrices (exact PyTorch semantics), built on host.
    mh = jnp.asarray(bicubic_matrix(H, s))                       # (Ho, H)
    ph = jnp.asarray(bilinear_ac_matrix(H, s))                   # (Ho, H)
    mw_np = np.ascontiguousarray(bicubic_matrix(W, s).T)         # (W, Wo)
    pw_np = np.ascontiguousarray(bilinear_ac_matrix(W, s).T)
    if TB > 1:
        eye = np.eye(TB, dtype=np.float32)
        mw_np = np.kron(eye, mw_np)                              # (TB*W, TB*Wo) block diag
        pw_np = np.kron(eye, pw_np)
    mw = jnp.asarray(mw_np)
    pw = jnp.asarray(pw_np)

    # TODO(synk): complex64 refs are not supported in Mosaic kernels, so real/imag
    # split + recombine stays in the JAX wrapper (input-sized passes).
    re = jnp.real(x)
    im = jnp.imag(x)

    def pack(a):  # (N, C, H, W) -> (G, H, TB*W)
        if TB == 1:
            return a.reshape(G, H, W)
        return a.reshape(G, TB, H, W).transpose(0, 2, 1, 3).reshape(G, H, TB * W)

    xin = jnp.stack([pack(re), pack(im)], axis=1)                # (G, 2, H, TB*W)

    out = _build_call(G, R, TB, RT, H, W, Ho, Wo, vmem_limit)(xin, mw, mh, pw, ph)

    def unpack(a):  # (G, Ho, TB*Wo) -> (N, C, Ho, Wo)
        if TB == 1:
            return a.reshape(N, C, Ho, Wo)
        return a.reshape(G, Ho, TB, Wo).transpose(0, 2, 1, 3).reshape(N, C, Ho, Wo)

    return jax.lax.complex(unpack(out[:, 0]), unpack(out[:, 1]))


# ------------------------------------- demo -------------------------------------

if __name__ == "__main__":
    key = jax.random.PRNGKey(0)
    k1, k2 = jax.random.split(key)
    N, C, H, W = 2, 4, 16, 16
    s = 2
    x_re = jax.random.normal(k1, (N, C, H, W), dtype=jnp.float32)
    x_im = jax.random.normal(k2, (N, C, H, W), dtype=jnp.float32)
    x = jax.lax.complex(x_re, x_im)                              # complex64

    f = jax.jit(complex_upsample, static_argnames=("scale_factor",))
    out = jax.block_until_ready(f(x, scale_factor=s))

    Ho, Wo = H * s, W * s
    assert out.shape == (N, C, Ho, Wo), out.shape
    assert out.dtype == jnp.complex64, out.dtype

    # float64 numpy reference with the same PyTorch-exact interpolation matrices.
    xr = np.asarray(x_re, dtype=np.float64)
    xi = np.asarray(x_im, dtype=np.float64) + 1e-10
    mag = np.sqrt(xr * xr + xi * xi)
    ang = np.arctan2(xi, xr)
    Mh = bicubic_matrix(H, s).astype(np.float64)
    Mw = bicubic_matrix(W, s).astype(np.float64)
    Ph = bilinear_ac_matrix(H, s).astype(np.float64)
    Pw = bilinear_ac_matrix(W, s).astype(np.float64)
    mag_u = np.einsum("oh,nchw,pw->ncop", Mh, mag, Mw)
    ang_u = np.einsum("oh,nchw,pw->ncop", Ph, ang, Pw)
    ref = mag_u * np.cos(ang_u) + 1j * mag_u * np.sin(ang_u)
    err = float(np.max(np.abs(np.asarray(out) - ref)))
    assert err < 2e-3, f"max abs error vs reference: {err}"
    print("KERNEL_OK")
</pallas_src>

<mosaic_0001>
module attributes {stable_mosaic.version = 11 : i64} {
  func.func @_upsample_kernel(%arg0: i32, %arg1: i32, %arg2: memref<1x2x16x64xf32, #tpu.memory_space<vmem>>, %arg3: memref<64x128xf32, #tpu.memory_space<vmem>>, %arg4: memref<32x16xf32, #tpu.memory_space<vmem>>, %arg5: memref<64x128xf32, #tpu.memory_space<vmem>>, %arg6: memref<32x16xf32, #tpu.memory_space<vmem>>, %arg7: memref<1x2x32x128xf32, #tpu.memory_space<vmem>>) attributes {dimension_semantics = [#tpu.dimension_semantics<parallel>, #tpu.dimension_semantics<parallel>], iteration_bounds = array<i64: 2, 1>, scalar_prefetch = 0 : i64, scratch_operands = 0 : i64, tpu.core_type = #tpu.core_type<tc>, window_params = [{transform_indices = @transform_0, window_bounds = array<i64: 1, 2, 16, 64>}, {pipeline_mode = #tpu.pipeline_mode<synchronous>, transform_indices = @transform_1, window_bounds = array<i64: 64, 128>}, {transform_indices = @transform_2, window_bounds = array<i64: 32, 16>}, {pipeline_mode = #tpu.pipeline_mode<synchronous>, transform_indices = @transform_3, window_bounds = array<i64: 64, 128>}, {transform_indices = @transform_4, window_bounds = array<i64: 32, 16>}, {transform_indices = @transform_5, window_bounds = array<i64: 1, 2, 32, 128>}]} {
    %c0 = arith.constant 0 : index
    %c0_0 = arith.constant 0 : index
    %c0_1 = arith.constant 0 : index
    %c0_2 = arith.constant 0 : index
    %0 = vector.load %arg2[%c0, %c0_0, %c0_1, %c0_2] : memref<1x2x16x64xf32, #tpu.memory_space<vmem>>, vector<1x1x16x64xf32>
    %1 = vector.shape_cast %0 : vector<1x1x16x64xf32> to vector<16x64xf32>
    %c0_3 = arith.constant 0 : index
    %c1 = arith.constant 1 : index
    %c0_4 = arith.constant 0 : index
    %c0_5 = arith.constant 0 : index
    %2 = vector.load %arg2[%c0_3, %c1, %c0_4, %c0_5] : memref<1x2x16x64xf32, #tpu.memory_space<vmem>>, vector<1x1x16x64xf32>
    %3 = vector.shape_cast %2 : vector<1x1x16x64xf32> to vector<16x64xf32>
    %cst = arith.constant 1.000000e-10 : f32
    %4 = vector.broadcast %cst : f32 to vector<16x64xf32>
    %5 = arith.addf %3, %4 : vector<16x64xf32>
    %6 = arith.mulf %1, %1 : vector<16x64xf32>
    %7 = arith.mulf %5, %5 : vector<16x64xf32>
    %8 = arith.addf %6, %7 : vector<16x64xf32>
    %9 = math.sqrt %8 : vector<16x64xf32>
    %10 = math.atan2 %5, %1 : vector<16x64xf32>
    %c0_6 = arith.constant 0 : index
    %c0_7 = arith.constant 0 : index
    %11 = vector.load %arg3[%c0_6, %c0_7] : memref<64x128xf32, #tpu.memory_space<vmem>>, vector<64x128xf32>
    %cst_8 = arith.constant dense<0.000000e+00> : vector<16x128xf32>
    %12 = tpu.matmul %9, %11, %cst_8 {dimension_numbers = #tpu.dot_dimension_numbers<[1], [0], [0], [1], [0, 0, 1, 1], [], []>} : vector<16x64xf32>, vector<64x128xf32>, vector<16x128xf32> -> vector<16x128xf32>
    %c0_9 = arith.constant 0 : index
    %c0_10 = arith.constant 0 : index
    %13 = vector.load %arg5[%c0_9, %c0_10] : memref<64x128xf32, #tpu.memory_space<vmem>>, vector<64x128xf32>
    %cst_11 = arith.constant dense<0.000000e+00> : vector<16x128xf32>
    %14 = tpu.matmul %10, %13, %cst_11 {dimension_numbers = #tpu.dot_dimension_numbers<[1], [0], [0], [1], [0, 0, 1, 1], [], []>} : vector<16x64xf32>, vector<64x128xf32>, vector<16x128xf32> -> vector<16x128xf32>
    %c0_12 = arith.constant 0 : index
    %c0_13 = arith.constant 0 : index
    %15 = vector.load %arg4[%c0_12, %c0_13] : memref<32x16xf32, #tpu.memory_space<vmem>>, vector<32x16xf32>
    %cst_14 = arith.constant dense<0.000000e+00> : vector<32x128xf32>
    %16 = tpu.matmul %15, %12, %cst_14 {dimension_numbers = #tpu.dot_dimension_numbers<[1], [0], [0], [1], [0, 0, 1, 1], [], []>} : vector<32x16xf32>, vector<16x128xf32>, vector<32x128xf32> -> vector<32x128xf32>
    %c0_15 = arith.constant 0 : index
    %c0_16 = arith.constant 0 : index
    %17 = vector.load %arg6[%c0_15, %c0_16] : memref<32x16xf32, #tpu.memory_space<vmem>>, vector<32x16xf32>
    %cst_17 = arith.constant dense<0.000000e+00> : vector<32x128xf32>
    %18 = tpu.matmul %17, %14, %cst_17 {dimension_numbers = #tpu.dot_dimension_numbers<[1], [0], [0], [1], [0, 0, 1, 1], [], []>} : vector<32x16xf32>, vector<16x128xf32>, vector<32x128xf32> -> vector<32x128xf32>
    %19 = math.cos %18 : vector<32x128xf32>
    %20 = arith.mulf %16, %19 : vector<32x128xf32>
    %c0_18 = arith.constant 0 : index
    %c0_19 = arith.constant 0 : index
    %c0_20 = arith.constant 0 : index
    %c0_21 = arith.constant 0 : index
    %21 = vector.load %arg7[%c0_18, %c0_19, %c0_20, %c0_21] : memref<1x2x32x128xf32, #tpu.memory_space<vmem>>, vector<1x1x32x128xf32>
    %22 = vector.shape_cast %21 : vector<1x1x32x128xf32> to vector<32x128xf32>
    %23 = vector.shape_cast %20 : vector<32x128xf32> to vector<1x1x32x128xf32>
    tpu.vector_store %arg7[%c0_18, %c0_19, %c0_20, %c0_21], %23 {strides = array<i32>} : memref<1x2x32x128xf32, #tpu.memory_space<vmem>>, vector<1x1x32x128xf32>,
    %24 = math.sin %18 : vector<32x128xf32>
    %25 = arith.mulf %16, %24 : vector<32x128xf32>
    %c0_22 = arith.constant 0 : index
    %c1_23 = arith.constant 1 : index
    %c0_24 = arith.constant 0 : index
    %c0_25 = arith.constant 0 : index
    %26 = vector.load %arg7[%c0_22, %c1_23, %c0_24, %c0_25] : memref<1x2x32x128xf32, #tpu.memory_space<vmem>>, vector<1x1x32x128xf32>
    %27 = vector.shape_cast %26 : vector<1x1x32x128xf32> to vector<32x128xf32>
    %28 = vector.shape_cast %25 : vector<32x128xf32> to vector<1x1x32x128xf32>
    tpu.vector_store %arg7[%c0_22, %c1_23, %c0_24, %c0_25], %28 {strides = array<i32>} : memref<1x2x32x128xf32, #tpu.memory_space<vmem>>, vector<1x1x32x128xf32>,
    return
  }
  func.func @transform_0(%arg0: i32, %arg1: i32) -> (i32, i32, i32, i32) {
    %c0_i32 = arith.constant 0 : i32
    %c0_i32_0 = arith.constant 0 : i32
    %c0_i32_1 = arith.constant 0 : i32
    %c0_i32_2 = arith.constant 0 : i32
    return %arg0, %c0_i32, %c0_i32_0, %c0_i32_1 : i32, i32, i32, i32
  }
  func.func @transform_1(%arg0: i32, %arg1: i32) -> (i32, i32) {
    %c0_i32 = arith.constant 0 : i32
    %c0_i32_0 = arith.constant 0 : i32
    %c0_i32_1 = arith.constant 0 : i32
    return %c0_i32, %c0_i32_0 : i32, i32
  }
  func.func @transform_2(%arg0: i32, %arg1: i32) -> (i32, i32) {
    %c0_i32 = arith.constant 0 : i32
    %c0_i32_0 = arith.constant 0 : i32
    return %arg1, %c0_i32 : i32, i32
  }
  func.func @transform_3(%arg0: i32, %arg1: i32) -> (i32, i32) {
    %c0_i32 = arith.constant 0 : i32
    %c0_i32_0 = arith.constant 0 : i32
    %c0_i32_1 = arith.constant 0 : i32
    return %c0_i32, %c0_i32_0 : i32, i32
  }
  func.func @transform_4(%arg0: i32, %arg1: i32) -> (i32, i32) {
    %c0_i32 = arith.constant 0 : i32
    %c0_i32_0 = arith.constant 0 : i32
    return %arg1, %c0_i32 : i32, i32
  }
  func.func @transform_5(%arg0: i32, %arg1: i32) -> (i32, i32, i32, i32) {
    %c0_i32 = arith.constant 0 : i32
    %c0_i32_0 = arith.constant 0 : i32
    %c0_i32_1 = arith.constant 0 : i32
    return %arg0, %c0_i32, %arg1, %c0_i32_0 : i32, i32, i32, i32
  }
}

</mosaic_0001>

<llo_original>
// kernel: custom-call.1
$region0: #{custom-call.1}
  %s0 = inlined_call_operand.hbm [shape: c64[2,4,16,16], index: 0, kind: input, shape index: {}]
  %s1 = inlined_call_operand.vmem [shape: f32[2,4,16,16], index: 1, kind: output, shape index: {}]
  %s2 = scalar_lea.hbm %s0, 2048
  $region1: #{custom-call.1} parent=0
    #allocation0 [shape = 's32[1]{0}', space=sflag, size = 0x4, scoped, tag = 'scoped memory for custom-call.1']
    %3 = vsyncpa [#allocation0], 0
    %s4 = sshll.u32 %s1, 4
    %s5 = int_to_ptr.vmem [resolvable:$true] %s4
    %7 = dma.hbm_to_vmem [thread:$0]  %s2, 2048, %s5, [#allocation0]
    %8 = dma.done [#allocation0], 2048
    %9 = vsyncpa [#allocation0], 1

// kernel: custom-call
$region0: #{custom-call}
  %s0 = inlined_call_operand.hbm [shape: c64[2,4,16,16], index: 0, kind: input, shape index: {}]
  %s1 = inlined_call_operand.vmem [shape: f32[2,4,16,16], index: 1, kind: output, shape index: {}]
  $region1: #{custom-call} parent=0
    #allocation0 [shape = 's32[1]{0}', space=sflag, size = 0x4, scoped, tag = 'scoped memory for custom-call']
    %2 = vsyncpa [#allocation0], 0
    %s3 = sshll.u32 %s1, 4
    %s4 = int_to_ptr.vmem [resolvable:$true] %s3
    %6 = dma.hbm_to_vmem [thread:$0]  %s0, 2048, %s4, [#allocation0]
    %7 = dma.done [#allocation0], 2048
    %8 = vsyncpa [#allocation0], 1

// kernel: squeeze.3
$region0: #{squeeze.3}
  %s0 = inlined_call_operand.vmem [shape: f32[2,1,32,128], index: 0, kind: input, shape index: {}]
  %s1 = inlined_call_operand.vmem [shape: f32[2,32,4,32], index: 1, kind: output, shape index: {}]
  $region1: #{squeeze.3} parent=0
    #allocation0 [shape = 'u8[262144]{0}', space=vmem, size = 0x40000, scoped, tag = 'scoped mem for output reshape']
    %v2 = vld [vmem:[%s0] sm:$0xff]
    %vm3 = vcmask 261120
    %4 = vst.msk [vmem:[#allocation0] ss:$8 sm:$0xf] %vm3, %v2
    %5 = vst.msk [vmem:[#allocation0] ss:$8 sm:$0xf0] %vm3, %v2
    %s6 = scalar_lea.vmem %s0, 8
    %v7 = vld [vmem:[%s6] sm:$0xff]
    %vm8 = vcmask 261120
    %s9 = scalar_lea.vmem [#allocation0], 64
    %10 = vst.msk [vmem:[%s9] ss:$8 sm:$0xf] %vm8, %v7
    %s11 = scalar_lea.vmem [#allocation0], 64
    %12 = vst.msk [vmem:[%s11] ss:$8 sm:$0xf0] %vm8, %v7
    %s13 = scalar_lea.vmem %s0, 16
    %v14 = vld [vmem:[%s13] sm:$0xff]
    %vm15 = vcmask 261120
    %s16 = scalar_lea.vmem [#allocation0], 128
    %17 = vst.msk [vmem:[%s16] ss:$8 sm:$0xf] %vm15, %v14
    %s18 = scalar_lea.vmem [#allocation0], 128
    %19 = vst.msk [vmem:[%s18] ss:$8 sm:$0xf0] %vm15, %v14
    %s20 = scalar_lea.vmem %s0, 24
    %v21 = vld [vmem:[%s20] sm:$0xff]
    %vm22 = vcmask 261120
    %s23 = scalar_lea.vmem [#allocation0], 192
    %24 = vst.msk [vmem:[%s23] ss:$8 sm:$0xf] %vm22, %v21
    %s25 = scalar_lea.vmem [#allocation0], 192
    %26 = vst.msk [vmem:[%s25] ss:$8 sm:$0xf0] %vm22, %v21
    %s27 = scalar_lea.vmem %s0, 32
    %v28 = vld [vmem:[%s27] sm:$0xff]
    %vm29 = vcmask 261120
    %s30 = scalar_lea.vmem [#allocation0], 256
    %31 = vst.msk [vmem:[%s30] ss:$8 sm:$0xf] %vm29, %v28
    %s32 = scalar_lea.vmem [#allocation0], 256
    %33 = vst.msk [vmem:[%s32] ss:$8 sm:$0xf0] %vm29, %v28
    %s34 = scalar_lea.vmem %s0, 40
    %v35 = vld [vmem:[%s34] sm:$0xff]
    %vm36 = vcmask 261120
    %s37 = scalar_lea.vmem [#allocation0], 320
    %38 = vst.msk [vmem:[%s37] ss:$8 sm:$0xf] %vm36, %v35
    %s39 = scalar_lea.vmem [#allocation0], 320
    %40 = vst.msk [vmem:[%s39] ss:$8 sm:$0xf0] %vm36, %v35
    %s41 = scalar_lea.vmem %s0, 48
    %v42 = vld [vmem:[%s41] sm:$0xff]
    %vm43 = vcmask 261120
    %s44 = scalar_lea.vmem [#allocation0], 384
    %45 = vst.msk [vmem:[%s44] ss:$8 sm:$0xf] %vm43, %v42
    %s46 = scalar_lea.vmem [#allocation0], 384
    %47 = vst.msk [vmem:[%s46] ss:$8 sm:$0xf0] %vm43, %v42
    %s48 = scalar_lea.vmem %s0, 56
    %v49 = vld [vmem:[%s48] sm:$0xff]
    %vm50 = vcmask 261120
    %s51 = scalar_lea.vmem [#allocation0], 448
    %52 = vst.msk [vmem:[%s51] ss:$8 sm:$0xf] %vm50, %v49
    %s53 = scalar_lea.vmem [#allocation0], 448
    %54 = vst.msk [vmem:[%s53] ss:$8 sm:$0xf0] %vm50, %v49
    %v55 = vld [vmem:[%s0] sm:$0xff]
    %56 = vrot.lane.b32.xlu0 %v55, 96
    %v57 = vpop.permute.xlu0 %56
    %vm58 = vcmask 261120
    %s59 = scalar_lea.vmem [#allocation0], 1
    %60 = vst.msk [vmem:[%s59] ss:$8 sm:$0xf] %vm58, %v57
    %s61 = scalar_lea.vmem [#allocation0], 1
    %62 = vst.msk [vmem:[%s61] ss:$8 sm:$0xf0] %vm58, %v57
    %s63 = scalar_lea.vmem %s0, 8
    %v64 = vld [vmem:[%s63] sm:$0xff]
    %65 = vrot.lane.b32.xlu0 %v64, 96
    %v66 = vpop.permute.xlu0 %65
    %vm67 = vcmask 261120
    %s68 = scalar_lea.vmem [#allocation0], 65
    %69 = vst.msk [vmem:[%s68] ss:$8 sm:$0xf] %vm67, %v66
    %s70 = scalar_lea.vmem [#allocation0], 65
    %71 = vst.msk [vmem:[%s70] ss:$8 sm:$0xf0] %vm67, %v66
    %s72 = scalar_lea.vmem %s0, 16
    %v73 = vld [vmem:[%s72] sm:$0xff]
    %74 = vrot.lane.b32.xlu0 %v73, 96
    %v75 = vpop.permute.xlu0 %74
    %vm76 = vcmask 261120
    %s77 = scalar_lea.vmem [#allocation0], 129
    %78 = vst.msk [vmem:[%s77] ss:$8 sm:$0xf] %vm76, %v75
    %s79 = scalar_lea.vmem [#allocation0], 129
    %80 = vst.msk [vmem:[%s79] ss:$8 sm:$0xf0] %vm76, %v75
    %s81 = scalar_lea.vmem %s0, 24
    %v82 = vld [vmem:[%s81] sm:$0xff]
    %83 = vrot.lane.b32.xlu0 %v82, 96
    %v84 = vpop.permute.xlu0 %83
    %vm85 = vcmask 261120
    %s86 = scalar_lea.vmem [#allocation0], 193
    %87 = vst.msk [vmem:[%s86] ss:$8 sm:$0xf] %vm85, %v84
    %s88 = scalar_lea.vmem [#allocation0], 193
    %89 = vst.msk [vmem:[%s88] ss:$8 sm:$0xf0] %vm85, %v84
    %s90 = scalar_lea.vmem %s0, 32
    %v91 = vld [vmem:[%s90] sm:$0xff]
    %92 = vrot.lane.b32.xlu0 %v91, 96
    %v93 = vpop.permute.xlu0 %92
    %vm94 = vcmask 261120
    %s95 = scalar_lea.vmem [#allocation0], 257
    %96 = vst.msk [vmem:[%s95] ss:$8 sm:$0xf] %vm94, %v93
    %s97 = scalar_lea.vmem [#allocation0], 257
    %98 = vst.msk [vmem:[%s97] ss:$8 sm:$0xf0] %vm94, %v93
    %s99 = scalar_lea.vmem %s0, 40
    %v100 = vld [vmem:[%s99] sm:$0xff]
    %101 = vrot.lane.b32.xlu0 %v100, 96
    %v102 = vpop.permute.xlu0 %101
    %vm103 = vcmask 261120
    %s104 = scalar_lea.vmem [#allocation0], 321
    %105 = vst.msk [vmem:[%s104] ss:$8 sm:$0xf] %vm103, %v102
    %s106 = scalar_lea.vmem [#allocation0], 321
    %107 = vst.msk [vmem:[%s106] ss:$8 sm:$0xf0] %vm103, %v102
    %s108 = scalar_lea.vmem %s0, 48
    %v109 = vld [vmem:[%s108] sm:$0xff]
    %110 = vrot.lane.b32.xlu0 %v109, 96
    %v111 = vpop.permute.xlu0 %110
    %vm112 = vcmask 261120
    %s113 = scalar_lea.vmem [#allocation0], 385
    %114 = vst.msk [vmem:[%s113] ss:$8 sm:$0xf] %vm112, %v111
    %s115 = scalar_lea.vmem [#allocation0], 385
    %116 = vst.msk [vmem:[%s115] ss:$8 sm:$0xf0] %vm112, %v111
    %s117 = scalar_lea.vmem %s0, 56
    %v118 = vld [vmem:[%s117] sm:$0xff]
    %119 = vrot.lane.b32.xlu0 %v118, 96
    %v120 = vpop.permute.xlu0 %119
    %vm121 = vcmask 261120
    %s122 = scalar_lea.vmem [#allocation0], 449
    %123 = vst.msk [vmem:[%s122] ss:$8 sm:$0xf] %vm121, %v120
    %s124 = scalar_lea.vmem [#allocation0], 449
    %125 = vst.msk [vmem:[%s124] ss:$8 sm:$0xf0] %vm121, %v120
    %v126 = vld [vmem:[%s0] sm:$0xff]
    %127 = vrot.lane.b32.xlu0 %v126, 64
    %v128 = vpop.permute.xlu0 %127
    %vm129 = vcmask 261120
    %s130 = scalar_lea.vmem [#allocation0], 2
    %131 = vst.msk [vmem:[%s130] ss:$8 sm:$0xf] %vm129, %v128
    %s132 = scalar_lea.vmem [#allocation0], 2
    %133 = vst.msk [vmem:[%s132] ss:$8 sm:$0xf0] %vm129, %v128
    %s134 = scalar_lea.vmem %s0, 8
    %v135 = vld [vmem:[%s134] sm:$0xff]
    %136 = vrot.lane.b32.xlu0 %v135, 64
    %v137 = vpop.permute.xlu0 %136
    %vm138 = vcmask 261120
    %s139 = scalar_lea.vmem [#allocation0], 66
    %140 = vst.msk [vmem:[%s139] ss:$8 sm:$0xf] %vm138, %v137
    %s141 = scalar_lea.vmem [#allocation0], 66
    %142 = vst.msk [vmem:[%s141] ss:$8 sm:$0xf0] %vm138, %v137
    %s143 = scalar_lea.vmem %s0, 16
    %v144 = vld [vmem:[%s143] sm:$0xff]
    %145 = vrot.lane.b32.xlu0 %v144, 64
    %v146 = vpop.permute.xlu0 %145
    %vm147 = vcmask 261120
    %s148 = scalar_lea.vmem [#allocation0], 130
    %149 = vst.msk [vmem:[%s148] ss:$8 sm:$0xf] %vm147, %v146
    %s150 = scalar_lea.vmem [#allocation0], 130
    %151 = vst.msk [vmem:[%s150] ss:$8 sm:$0xf0] %vm147, %v146
    %s152 = scalar_lea.vmem %s0, 24
    %v153 = vld [vmem:[%s152] sm:$0xff]
    %154 = vrot.lane.b32.xlu0 %v153, 64
    %v155 = vpop.permute.xlu0 %154
    %vm156 = vcmask 261120
    %s157 = scalar_lea.vmem [#allocation0], 194
    %158 = vst.msk [vmem:[%s157] ss:$8 sm:$0xf] %vm156, %v155
    %s159 = scalar_lea.vmem [#allocation0], 194
    %160 = vst.msk [vmem:[%s159] ss:$8 sm:$0xf0] %vm156, %v155
    %s161 = scalar_lea.vmem %s0, 32
    %v162 = vld [vmem:[%s161] sm:$0xff]
    %163 = vrot.lane.b32.xlu0 %v162, 64
    %v164 = vpop.permute.xlu0 %163
    %vm165 = vcmask 261120
    %s166 = scalar_lea.vmem [#allocation0], 258
    %167 = vst.msk [vmem:[%s166] ss:$8 sm:$0xf] %vm165, %v164
    %s168 = scalar_lea.vmem [#allocation0], 258
    %169 = vst.msk [vmem:[%s168] ss:$8 sm:$0xf0] %vm165, %v164
    %s170 = scalar_lea.vmem %s0, 40
    %v171 = vld [vmem:[%s170] sm:$0xff]
    %172 = vrot.lane.b32.xlu0 %v171, 64
    %v173 = vpop.permute.xlu0 %172
    %vm174 = vcmask 261120
    %s175 = scalar_lea.vmem [#allocation0], 322
    %176 = vst.msk [vmem:[%s175] ss:$8 sm:$0xf] %vm174, %v173
    %s177 = scalar_lea.vmem [#allocation0], 322
    %178 = vst.msk [vmem:[%s177] ss:$8 sm:$0xf0] %vm174, %v173
    %s179 = scalar_lea.vmem %s0, 48
    %v180 = vld [vmem:[%s179] sm:$0xff]
    %181 = vrot.lane.b32.xlu0 %v180, 64
    %v182 = vpop.permute.xlu0 %181
    %vm183 = vcmask 261120
    %s184 = scalar_lea.vmem [#allocation0], 386
    %185 = vst.msk [vmem:[%s184] ss:$8 sm:$0xf] %vm183, %v182
    %s186 = scalar_lea.vmem [#allocation0], 386
    %187 = vst.msk [vmem:[%s186] ss:$8 sm:$0xf0] %vm183, %v182
    %s188 = scalar_lea.vmem %s0, 56
    %v189 = vld [vmem:[%s188] sm:$0xff]
    %190 = vrot.lane.b32.xlu0 %v189, 64
    %v191 = vpop.permute.xlu0 %190
    %vm192 = vcmask 261120
    %s193 = scalar_lea.vmem [#allocation0], 450
    %194 = vst.msk [vmem:[%s193] ss:$8 sm:$0xf] %vm192, %v191
    %s195 = scalar_lea.vmem [#allocation0], 450
    %196 = vst.msk [vmem:[%s195] ss:$8 sm:$0xf0] %vm192, %v191
    %v197 = vld [vmem:[%s0] sm:$0xff]
    %198 = vrot.lane.b32.xlu0 %v197, 32
    %v199 = vpop.permute.xlu0 %198
    %vm200 = vcmask 261120
    %s201 = scalar_lea.vmem [#allocation0], 3
    %202 = vst.msk [vmem:[%s201] ss:$8 sm:$0xf] %vm200, %v199
    %s203 = scalar_lea.vmem [#allocation0], 3
    %204 = vst.msk [vmem:[%s203] ss:$8 sm:$0xf0] %vm200, %v199
    %s205 = scalar_lea.vmem %s0, 8
    %v206 = vld [vmem:[%s205] sm:$0xff]
    %207 = vrot.lane.b32.xlu0 %v206, 32
    %v208 = vpop.permute.xlu0 %207
    %vm209 = vcmask 261120
    %s210 = scalar_lea.vmem [#allocation0], 67
    %211 = vst.msk [vmem:[%s210] ss:$8 sm:$0xf] %vm209, %v208
    %s212 = scalar_lea.vmem [#allocation0], 67
    %213 = vst.msk [vmem:[%s212] ss:$8 sm:$0xf0] %vm209, %v208
    %s214 = scalar_lea.vmem %s0, 16
    %v215 = vld [vmem:[%s214] sm:$0xff]
    %216 = vrot.lane.b32.xlu0 %v215, 32
    %v217 = vpop.permute.xlu0 %216
    %vm218 = vcmask 261120
    %s219 = scalar_lea.vmem [#allocation0], 131
    %220 = vst.msk [vmem:[%s219] ss:$8 sm:$0xf] %vm218, %v217
    %s221 = scalar_lea.vmem [#allocation0], 131
    %222 = vst.msk [vmem:[%s221] ss:$8 sm:$0xf0] %vm218, %v217
    %s223 = scalar_lea.vmem %s0, 24
    %v224 = vld [vmem:[%s223] sm:$0xff]
    %225 = vrot.lane.b32.xlu0 %v224, 32
    %v226 = vpop.permute.xlu0 %225
    %vm227 = vcmask 261120
    %s228 = scalar_lea.vmem [#allocation0], 195
    %229 = vst.msk [vmem:[%s228] ss:$8 sm:$0xf] %vm227, %v226
    %s230 = scalar_lea.vmem [#allocation0], 195
    %231 = vst.msk [vmem:[%s230] ss:$8 sm:$0xf0] %vm227, %v226
    %s232 = scalar_lea.vmem %s0, 32
    %v233 = vld [vmem:[%s232] sm:$0xff]
    %234 = vrot.lane.b32.xlu0 %v233, 32
    %v235 = vpop.permute.xlu0 %234
    %vm236 = vcmask 261120
    %s237 = scalar_lea.vmem [#allocation0], 259
    %238 = vst.msk [vmem:[%s237] ss:$8 sm:$0xf] %vm236, %v235
    %s239 = scalar_lea.vmem [#allocation0], 259
    %240 = vst.msk [vmem:[%s239] ss:$8 sm:$0xf0] %vm236, %v235
    %s241 = scalar_lea.vmem %s0, 40
    %v242 = vld [vmem:[%s241] sm:$0xff]
    %243 = vrot.lane.b32.xlu0 %v242, 32
    %v244 = vpop.permute.xlu0 %243
    %vm245 = vcmask 261120
    %s246 = scalar_lea.vmem [#allocation0], 323
    %247 = vst.msk [vmem:[%s246] ss:$8 sm:$0xf] %vm245, %v244
    %s248 = scalar_lea.vmem [#allocation0], 323
    %249 = vst.msk [vmem:[%s248] ss:$8 sm:$0xf0] %vm245, %v244
    %s250 = scalar_lea.vmem %s0, 48
    %v251 = vld [vmem:[%s250] sm:$0xff]
    %252 = vrot.lane.b32.xlu0 %v251, 32
    %v253 = vpop.permute.xlu0 %252
    %vm254 = vcmask 261120
    %s255 = scalar_lea.vmem [#allocation0], 387
    %256 = vst.msk [vmem:[%s255] ss:$8 sm:$0xf] %vm254, %v253
    %s257 = scalar_lea.vmem [#allocation0], 387
    %258 = vst.msk [vmem:[%s257] ss:$8 sm:$0xf0] %vm254, %v253
    %s259 = scalar_lea.vmem %s0, 56
    %v260 = vld [vmem:[%s259] sm:$0xff]
    %261 = vrot.lane.b32.xlu0 %v260, 32
    %v262 = vpop.permute.xlu0 %261
    %vm263 = vcmask 261120
    %s264 = scalar_lea.vmem [#allocation0], 451
    %265 = vst.msk [vmem:[%s264] ss:$8 sm:$0xf] %vm263, %v262
    %s266 = scalar_lea.vmem [#allocation0], 451
    %267 = vst.msk [vmem:[%s266] ss:$8 sm:$0xf0] %vm263, %v262
    %s269 = sshll.u32 1, 4
    %s270 = ssub.s32 %s269, 1
    %v272 = vld [vmem:[#allocation0] sm:%s270]
    %s273 = sshll.u32 1, 4
    %s274 = ssub.s32 %s273, 1
    %275 = vst [vmem:[%s1] sm:%s274] %v272
    %s276 = scalar_lea.vmem [#allocation0], 8
    %v277 = vld [vmem:[%s276] sm:%s270]
    %s278 = sshll.u32 1, 4
    %s279 = ssub.s32 %s278, 1
    %s280 = scalar_lea.vmem %s1, 4
    %281 = vst [vmem:[%s280] sm:%s279] %v277
    %s282 = scalar_lea.vmem [#allocation0], 16
    %v283 = vld [vmem:[%s282] sm:%s270]
    %s284 = sshll.u32 1, 4
    %s285 = ssub.s32 %s284, 1
    %s286 = smul.addr 4, 2
    %s287 = scalar_lea.vmem %s1, %s286
    %288 = vst [vmem:[%s287] sm:%s285] %v283
    %s289 = scalar_lea.vmem [#allocation0], 24
    %v290 = vld [vmem:[%s289] sm:%s270]
    %s291 = sshll.u32 1, 4
    %s292 = ssub.s32 %s291, 1
    %s293 = smul.addr 4, 3
    %s294 = scalar_lea.vmem %s1, %s293
    %295 = vst [vmem:[%s294] sm:%s292] %v290
    %s296 = scalar_lea.vmem [#allocation0], 32
    %v297 = vld [vmem:[%s296] sm:%s270]
    %s298 = sshll.u32 1, 4
    %s299 = ssub.s32 %s298, 1
    %s300 = smul.addr 4, 4
    %s301 = scalar_lea.vmem %s1, %s300
    %302 = vst [vmem:[%s301] sm:%s299] %v297
    %s303 = scalar_lea.vmem [#allocation0], 40
    %v304 = vld [vmem:[%s303] sm:%s270]
    %s305 = sshll.u32 1, 4
    %s306 = ssub.s32 %s305, 1
    %s307 = smul.addr 4, 5
    %s308 = scalar_lea.vmem %s1, %s307
    %309 = vst [vmem:[%s308] sm:%s306] %v304
    %s310 = scalar_lea.vmem [#allocation0], 48
    %v311 = vld [vmem:[%s310] sm:%s270]
    %s312 = sshll.u32 1, 4
    %s313 = ssub.s32 %s312, 1
    %s314 = smul.addr 4, 6
    %s315 = scalar_lea.vmem %s1, %s314
    %316 = vst [vmem:[%s315] sm:%s313] %v311
    %s317 = scalar_lea.vmem [#allocation0], 56
    %v318 = vld [vmem:[%s317] sm:%s270]
    %s319 = sshll.u32 1, 4
    %s320 = ssub.s32 %s319, 1
    %s321 = smul.addr 4, 7
    %s322 = scalar_lea.vmem %s1, %s321
    %323 = vst [vmem:[%s322] sm:%s320] %v318
    %s324 = scalar_lea.vmem [#allocation0], 64
    %v325 = vld [vmem:[%s324] sm:%s270]
    %s326 = sshll.u32 1, 4
    %s327 = ssub.s32 %s326, 1
    %s328 = smul.addr 4, 8
    %s329 = scalar_lea.vmem %s1, %s328
    %330 = vst [vmem:[%s329] sm:%s327] %v325
    %s331 = scalar_lea.vmem [#allocation0], 72
    %v332 = vld [vmem:[%s331] sm:%s270]
    %s333 = sshll.u32 1, 4
    %s334 = ssub.s32 %s333, 1
    %s335 = smul.addr 4, 9
    %s336 = scalar_lea.vmem %s1, %s335
    %337 = vst [vmem:[%s336] sm:%s334] %v332
    %s338 = scalar_lea.vmem [#allocation0], 80
    %v339 = vld [vmem:[%s338] sm:%s270]
    %s340 = sshll.u32 1, 4
    %s341 = ssub.s32 %s340, 1
    %s342 = smul.addr 4, 10
    %s343 = scalar_lea.vmem %s1, %s342
    %344 = vst [vmem:[%s343] sm:%s341] %v339
    %s345 = scalar_lea.vmem [#allocation0], 88
    %v346 = vld [vmem:[%s345] sm:%s270]
    %s347 = sshll.u32 1, 4
    %s348 = ssub.s32 %s347, 1
    %s349 = smul.addr 4, 11
    %s350 = scalar_lea.vmem %s1, %s349
    %351 = vst [vmem:[%s350] sm:%s348] %v346
    %s352 = scalar_lea.vmem [#allocation0], 96
    %v353 = vld [vmem:[%s352] sm:%s270]
    %s354 = sshll.u32 1, 4
    %s355 = ssub.s32 %s354, 1
    %s356 = smul.addr 4, 12
    %s357 = scalar_lea.vmem %s1, %s356
    %358 = vst [vmem:[%s357] sm:%s355] %v353
    %s359 = scalar_lea.vmem [#allocation0], 104
    %v360 = vld [vmem:[%s359] sm:%s270]
    %s361 = sshll.u32 1, 4
    %s362 = ssub.s32 %s361, 1
    %s363 = smul.addr 4, 13
    %s364 = scalar_lea.vmem %s1, %s363
    %365 = vst [vmem:[%s364] sm:%s362] %v360
    %s366 = scalar_lea.vmem [#allocation0], 112
    %v367 = vld [vmem:[%s366] sm:%s270]
    %s368 = sshll.u32 1, 4
    %s369 = ssub.s32 %s368, 1
    %s370 = smul.addr 4, 14
    %s371 = scalar_lea.vmem %s1, %s370
    %372 = vst [vmem:[%s371] sm:%s369] %v367
    %s373 = scalar_lea.vmem [#allocation0], 120
    %v374 = vld [vmem:[%s373] sm:%s270]
    %s375 = sshll.u32 1, 4
    %s376 = ssub.s32 %s375, 1
    %s377 = smul.addr 4, 15
    %s378 = scalar_lea.vmem %s1, %s377
    %379 = vst [vmem:[%s378] sm:%s376] %v374
    %s380 = scalar_lea.vmem [#allocation0], 128
    %v381 = vld [vmem:[%s380] sm:%s270]
    %s382 = sshll.u32 1, 4
    %s383 = ssub.s32 %s382, 1
    %s384 = smul.addr 4, 16
    %s385 = scalar_lea.vmem %s1, %s384
    %386 = vst [vmem:[%s385] sm:%s383] %v381
    %s387 = scalar_lea.vmem [#allocation0], 136
    %v388 = vld [vmem:[%s387] sm:%s270]
    %s389 = sshll.u32 1, 4
    %s390 = ssub.s32 %s389, 1
    %s391 = smul.addr 4, 17
    %s392 = scalar_lea.vmem %s1, %s391
    %393 = vst [vmem:[%s392] sm:%s390] %v388
    %s394 = scalar_lea.vmem [#allocation0], 144
    %v395 = vld [vmem:[%s394] sm:%s270]
    %s396 = sshll.u32 1, 4
    %s397 = ssub.s32 %s396, 1
    %s398 = smul.addr 4, 18
    %s399 = scalar_lea.vmem %s1, %s398
    %400 = vst [vmem:[%s399] sm:%s397] %v395
    %s401 = scalar_lea.vmem [#allocation0], 152
    %v402 = vld [vmem:[%s401] sm:%s270]
    %s403 = sshll.u32 1, 4
    %s404 = ssub.s32 %s403, 1
    %s405 = smul.addr 4, 19
    %s406 = scalar_lea.vmem %s1, %s405
    %407 = vst [vmem:[%s406] sm:%s404] %v402
    %s408 = scalar_lea.vmem [#allocation0], 160
    %v409 = vld [vmem:[%s408] sm:%s270]
    %s410 = sshll.u32 1, 4
    %s411 = ssub.s32 %s410, 1
    %s412 = smul.addr 4, 20
    %s413 = scalar_lea.vmem %s1, %s412
    %414 = vst [vmem:[%s413] sm:%s411] %v409
    %s415 = scalar_lea.vmem [#allocation0], 168
    %v416 = vld [vmem:[%s415] sm:%s270]
    %s417 = sshll.u32 1, 4
    %s418 = ssub.s32 %s417, 1
    %s419 = smul.addr 4, 21
    %s420 = scalar_lea.vmem %s1, %s419
    %421 = vst [vmem:[%s420] sm:%s418] %v416
    %s422 = scalar_lea.vmem [#allocation0], 176
    %v423 = vld [vmem:[%s422] sm:%s270]
    %s424 = sshll.u32 1, 4
    %s425 = ssub.s32 %s424, 1
    %s426 = smul.addr 4, 22
    %s427 = scalar_lea.vmem %s1, %s426
    %428 = vst [vmem:[%s427] sm:%s425] %v423
    %s429 = scalar_lea.vmem [#allocation0], 184
    %v430 = vld [vmem:[%s429] sm:%s270]
    %s431 = sshll.u32 1, 4
    %s432 = ssub.s32 %s431, 1
    %s433 = smul.addr 4, 23
    %s434 = scalar_lea.vmem %s1, %s433
    %435 = vst [vmem:[%s434] sm:%s432] %v430
    %s436 = scalar_lea.vmem [#allocation0], 192
    %v437 = vld [vmem:[%s436] sm:%s270]
    %s438 = sshll.u32 1, 4
    %s439 = ssub.s32 %s438, 1
    %s440 = smul.addr 4, 24
    %s441 = scalar_lea.vmem %s1, %s440
    %442 = vst [vmem:[%s441] sm:%s439] %v437
    %s443 = scalar_lea.vmem [#allocation0], 200
    %v444 = vld [vmem:[%s443] sm:%s270]
    %s445 = sshll.u32 1, 4
    %s446 = ssub.s32 %s445, 1
    %s447 = smul.addr 4, 25
    %s448 = scalar_lea.vmem %s1, %s447
    %449 = vst [vmem:[%s448] sm:%s446] %v444
    %s450 = scalar_lea.vmem [#allocation0], 208
    %v451 = vld [vmem:[%s450] sm:%s270]
    %s452 = sshll.u32 1, 4
    %s453 = ssub.s32 %s452, 1
    %s454 = smul.addr 4, 26
    %s455 = scalar_lea.vmem %s1, %s454
    %456 = vst [vmem:[%s455] sm:%s453] %v451
    %s457 = scalar_lea.vmem [#allocation0], 216
    %v458 = vld [vmem:[%s457] sm:%s270]
    %s459 = sshll.u32 1, 4
    %s460 = ssub.s32 %s459, 1
    %s461 = smul.addr 4, 27
    %s462 = scalar_lea.vmem %s1, %s461
    %463 = vst [vmem:[%s462] sm:%s460] %v458
    %s464 = scalar_lea.vmem [#allocation0], 224
    %v465 = vld [vmem:[%s464] sm:%s270]
    %s466 = sshll.u32 1, 4
    %s467 = ssub.s32 %s466, 1
    %s468 = smul.addr 4, 28
    %s469 = scalar_lea.vmem %s1, %s468
    %470 = vst [vmem:[%s469] sm:%s467] %v465
    %s471 = scalar_lea.vmem [#allocation0], 232
    %v472 = vld [vmem:[%s471] sm:%s270]
    %s473 = sshll.u32 1, 4
    %s474 = ssub.s32 %s473, 1
    %s475 = smul.addr 4, 29
    %s476 = scalar_lea.vmem %s1, %s475
    %477 = vst [vmem:[%s476] sm:%s474] %v472
    %s478 = scalar_lea.vmem [#allocation0], 240
    %v479 = vld [vmem:[%s478] sm:%s270]
    %s480 = sshll.u32 1, 4
    %s481 = ssub.s32 %s480, 1
    %s482 = smul.addr 4, 30
    %s483 = scalar_lea.vmem %s1, %s482
    %484 = vst [vmem:[%s483] sm:%s481] %v479
    %s485 = scalar_lea.vmem [#allocation0], 248
    %v486 = vld [vmem:[%s485] sm:%s270]
    %s487 = sshll.u32 1, 4
    %s488 = ssub.s32 %s487, 1
    %s489 = smul.addr 4, 31
    %s490 = scalar_lea.vmem %s1, %s489
    %491 = vst [vmem:[%s490] sm:%s488] %v486
    %s492 = scalar_lea.vmem [#allocation0], 256
    %v493 = vld [vmem:[%s492] sm:%s270]
    %s494 = sshll.u32 1, 4
    %s495 = ssub.s32 %s494, 1
    %s496 = smul.addr 4, 32
    %s497 = scalar_lea.vmem %s1, %s496
    %498 = vst [vmem:[%s497] sm:%s495] %v493
    %s499 = scalar_lea.vmem [#allocation0], 264
    %v500 = vld [vmem:[%s499] sm:%s270]
    %s501 = sshll.u32 1, 4
    %s502 = ssub.s32 %s501, 1
    %s503 = smul.addr 4, 33
    %s504 = scalar_lea.vmem %s1, %s503
    %505 = vst [vmem:[%s504] sm:%s502] %v500
    %s506 = scalar_lea.vmem [#allocation0], 272
    %v507 = vld [vmem:[%s506] sm:%s270]
    %s508 = sshll.u32 1, 4
    %s509 = ssub.s32 %s508, 1
    %s510 = smul.addr 4, 34
    %s511 = scalar_lea.vmem %s1, %s510
    %512 = vst [vmem:[%s511] sm:%s509] %v507
    %s513 = scalar_lea.vmem [#allocation0], 280
    %v514 = vld [vmem:[%s513] sm:%s270]
    %s515 = sshll.u32 1, 4
    %s516 = ssub.s32 %s515, 1
    %s517 = smul.addr 4, 35
    %s518 = scalar_lea.vmem %s1, %s517
    %519 = vst [vmem:[%s518] sm:%s516] %v514
    %s520 = scalar_lea.vmem [#allocation0], 288
    %v521 = vld [vmem:[%s520] sm:%s270]
    %s522 = sshll.u32 1, 4
    %s523 = ssub.s32 %s522, 1
    %s524 = smul.addr 4, 36
    %s525 = scalar_lea.vmem %s1, %s524
    %526 = vst [vmem:[%s525] sm:%s523] %v521
    %s527 = scalar_lea.vmem [#allocation0], 296
    %v528 = vld [vmem:[%s527] sm:%s270]
    %s529 = sshll.u32 1, 4
    %s530 = ssub.s32 %s529, 1
    %s531 = smul.addr 4, 37
    %s532 = scalar_lea.vmem %s1, %s531
    %533 = vst [vmem:[%s532] sm:%s530] %v528
    %s534 = scalar_lea.vmem [#allocation0], 304
    %v535 = vld [vmem:[%s534] sm:%s270]
    %s536 = sshll.u32 1, 4
    %s537 = ssub.s32 %s536, 1
    %s538 = smul.addr 4, 38
    %s539 = scalar_lea.vmem %s1, %s538
    %540 = vst [vmem:[%s539] sm:%s537] %v535
    %s541 = scalar_lea.vmem [#allocation0], 312
    %v542 = vld [vmem:[%s541] sm:%s270]
    %s543 = sshll.u32 1, 4
    %s544 = ssub.s32 %s543, 1
    %s545 = smul.addr 4, 39
    %s546 = scalar_lea.vmem %s1, %s545
    %547 = vst [vmem:[%s546] sm:%s544] %v542
    %s548 = scalar_lea.vmem [#allocation0], 320
    %v549 = vld [vmem:[%s548] sm:%s270]
    %s550 = sshll.u32 1, 4
    %s551 = ssub.s32 %s550, 1
    %s552 = smul.addr 4, 40
    %s553 = scalar_lea.vmem %s1, %s552
    %554 = vst [vmem:[%s553] sm:%s551] %v549
    %s555 = scalar_lea.vmem [#allocation0], 328
    %v556 = vld [vmem:[%s555] sm:%s270]
    %s557 = sshll.u32 1, 4
    %s558 = ssub.s32 %s557, 1
    %s559 = smul.addr 4, 41
    %s560 = scalar_lea.vmem %s1, %s559
    %561 = vst [vmem:[%s560] sm:%s558] %v556
    %s562 = scalar_lea.vmem [#allocation0], 336
    %v563 = vld [vmem:[%s562] sm:%s270]
    %s564 = sshll.u32 1, 4
    %s565 = ssub.s32 %s564, 1
    %s566 = smul.addr 4, 42
    %s567 = scalar_lea.vmem %s1, %s566
    %568 = vst [vmem:[%s567] sm:%s565] %v563
    %s569 = scalar_lea.vmem [#allocation0], 344
    %v570 = vld [vmem:[%s569] sm:%s270]
    %s571 = sshll.u32 1, 4
    %s572 = ssub.s32 %s571, 1
    %s573 = smul.addr 4, 43
    %s574 = scalar_lea.vmem %s1, %s573
    %575 = vst [vmem:[%s574] sm:%s572] %v570
    %s576 = scalar_lea.vmem [#allocation0], 352
    %v577 = vld [vmem:[%s576] sm:%s270]
    %s578 = sshll.u32 1, 4
    %s579 = ssub.s32 %s578, 1
    %s580 = smul.addr 4, 44
    %s581 = scalar_lea.vmem %s1, %s580
    %582 = vst [vmem:[%s581] sm:%s579] %v577
    %s583 = scalar_lea.vmem [#allocation0], 360
    %v584 = vld [vmem:[%s583] sm:%s270]
    %s585 = sshll.u32 1, 4
    %s586 = ssub.s32 %s585, 1
    %s587 = smul.addr 4, 45
    %s588 = scalar_lea.vmem %s1, %s587
    %589 = vst [vmem:[%s588] sm:%s586] %v584
    %s590 = scalar_lea.vmem [#allocation0], 368
    %v591 = vld [vmem:[%s590] sm:%s270]
    %s592 = sshll.u32 1, 4
    %s593 = ssub.s32 %s592, 1
    %s594 = smul.addr 4, 46
    %s595 = scalar_lea.vmem %s1, %s594
    %596 = vst [vmem:[%s595] sm:%s593] %v591
    %s597 = scalar_lea.vmem [#allocation0], 376
    %v598 = vld [vmem:[%s597] sm:%s270]
    %s599 = sshll.u32 1, 4
    %s600 = ssub.s32 %s599, 1
    %s601 = smul.addr 4, 47
    %s602 = scalar_lea.vmem %s1, %s601
    %603 = vst [vmem:[%s602] sm:%s600] %v598
    %s604 = scalar_lea.vmem [#allocation0], 384
    %v605 = vld [vmem:[%s604] sm:%s270]
    %s606 = sshll.u32 1, 4
    %s607 = ssub.s32 %s606, 1
    %s608 = smul.addr 4, 48
    %s609 = scalar_lea.vmem %s1, %s608
    %610 = vst [vmem:[%s609] sm:%s607] %v605
    %s611 = scalar_lea.vmem [#allocation0], 392
    %v612 = vld [vmem:[%s611] sm:%s270]
    %s613 = sshll.u32 1, 4
    %s614 = ssub.s32 %s613, 1
    %s615 = smul.addr 4, 49
    %s616 = scalar_lea.vmem %s1, %s615
    %617 = vst [vmem:[%s616] sm:%s614] %v612
    %s618 = scalar_lea.vmem [#allocation0], 400
    %v619 = vld [vmem:[%s618] sm:%s270]
    %s620 = sshll.u32 1, 4
    %s621 = ssub.s32 %s620, 1
    %s622 = smul.addr 4, 50
    %s623 = scalar_lea.vmem %s1, %s622
    %624 = vst [vmem:[%s623] sm:%s621] %v619
    %s625 = scalar_lea.vmem [#allocation0], 408
    %v626 = vld [vmem:[%s625] sm:%s270]
    %s627 = sshll.u32 1, 4
    %s628 = ssub.s32 %s627, 1
    %s629 = smul.addr 4, 51
    %s630 = scalar_lea.vmem %s1, %s629
    %631 = vst [vmem:[%s630] sm:%s628] %v626
    %s632 = scalar_lea.vmem [#allocation0], 416
    %v633 = vld [vmem:[%s632] sm:%s270]
    %s634 = sshll.u32 1, 4
    %s635 = ssub.s32 %s634, 1
    %s636 = smul.addr 4, 52
    %s637 = scalar_lea.vmem %s1, %s636
    %638 = vst [vmem:[%s637] sm:%s635] %v633
    %s639 = scalar_lea.vmem [#allocation0], 424
    %v640 = vld [vmem:[%s639] sm:%s270]
    %s641 = sshll.u32 1, 4
    %s642 = ssub.s32 %s641, 1
    %s643 = smul.addr 4, 53
    %s644 = scalar_lea.vmem %s1, %s643
    %645 = vst [vmem:[%s644] sm:%s642] %v640
    %s646 = scalar_lea.vmem [#allocation0], 432
    %v647 = vld [vmem:[%s646] sm:%s270]
    %s648 = sshll.u32 1, 4
    %s649 = ssub.s32 %s648, 1
    %s650 = smul.addr 4, 54
    %s651 = scalar_lea.vmem %s1, %s650
    %652 = vst [vmem:[%s651] sm:%s649] %v647
    %s653 = scalar_lea.vmem [#allocation0], 440
    %v654 = vld [vmem:[%s653] sm:%s270]
    %s655 = sshll.u32 1, 4
    %s656 = ssub.s32 %s655, 1
    %s657 = smul.addr 4, 55
    %s658 = scalar_lea.vmem %s1, %s657
    %659 = vst [vmem:[%s658] sm:%s656] %v654
    %s660 = scalar_lea.vmem [#allocation0], 448
    %v661 = vld [vmem:[%s660] sm:%s270]
    %s662 = sshll.u32 1, 4
    %s663 = ssub.s32 %s662, 1
    %s664 = smul.addr 4, 56
    %s665 = scalar_lea.vmem %s1, %s664
    %666 = vst [vmem:[%s665] sm:%s663] %v661
    %s667 = scalar_lea.vmem [#allocation0], 456
    %v668 = vld [vmem:[%s667] sm:%s270]
    %s669 = sshll.u32 1, 4
    %s670 = ssub.s32 %s669, 1
    %s671 = smul.addr 4, 57
    %s672 = scalar_lea.vmem %s1, %s671
    %673 = vst [vmem:[%s672] sm:%s670] %v668
    %s674 = scalar_lea.vmem [#allocation0], 464
    %v675 = vld [vmem:[%s674] sm:%s270]
    %s676 = sshll.u32 1, 4
    %s677 = ssub.s32 %s676, 1
    %s678 = smul.addr 4, 58
    %s679 = scalar_lea.vmem %s1, %s678
    %680 = vst [vmem:[%s679] sm:%s677] %v675
    %s681 = scalar_lea.vmem [#allocation0], 472
    %v682 = vld [vmem:[%s681] sm:%s270]
    %s683 = sshll.u32 1, 4
    %s684 = ssub.s32 %s683, 1
    %s685 = smul.addr 4, 59
    %s686 = scalar_lea.vmem %s1, %s685
    %687 = vst [vmem:[%s686] sm:%s684] %v682
    %s688 = scalar_lea.vmem [#allocation0], 480
    %v689 = vld [vmem:[%s688] sm:%s270]
    %s690 = sshll.u32 1, 4
    %s691 = ssub.s32 %s690, 1
    %s692 = smul.addr 4, 60
    %s693 = scalar_lea.vmem %s1, %s692
    %694 = vst [vmem:[%s693] sm:%s691] %v689
    %s695 = scalar_lea.vmem [#allocation0], 488
    %v696 = vld [vmem:[%s695] sm:%s270]
    %s697 = sshll.u32 1, 4
    %s698 = ssub.s32 %s697, 1
    %s699 = smul.addr 4, 61
    %s700 = scalar_lea.vmem %s1, %s699
    %701 = vst [vmem:[%s700] sm:%s698] %v696
    %s702 = scalar_lea.vmem [#allocation0], 496
    %v703 = vld [vmem:[%s702] sm:%s270]
    %s704 = sshll.u32 1, 4
    %s705 = ssub.s32 %s704, 1
    %s706 = smul.addr 4, 62
    %s707 = scalar_lea.vmem %s1, %s706
    %708 = vst [vmem:[%s707] sm:%s705] %v703
    %s709 = scalar_lea.vmem [#allocation0], 504
    %v710 = vld [vmem:[%s709] sm:%s270]
    %s711 = sshll.u32 1, 4
    %s712 = ssub.s32 %s711, 1
    %s713 = smul.addr 4, 63
    %s714 = scalar_lea.vmem %s1, %s713
    %715 = vst [vmem:[%s714] sm:%s712] %v710

// kernel: custom-call.2
$region0: #{custom-call.2}
  %s0 = inlined_call_operand.vmem [shape: f32[2,4,32,32], index: 0, kind: input, shape index: {}]
  %s1 = inlined_call_operand.vmem [shape: f32[2,4,32,32], index: 1, kind: input, shape index: {}]
  %s2 = inlined_call_operand.hbm [shape: c64[2,4,32,32], index: 2, kind: output, shape index: {}]
  %s3 = scalar_lea.hbm %s2, 4096
  $region1: #{custom-call.2} parent=0
    #allocation0 [shape = 's32[1]{0}', space=sflag, size = 0x4, scoped, tag = 'scoped memory for custom-call.2']
    %4 = vsyncpa [#allocation0], 0
    %s5 = sshll.u32 %s0, 4
    %s6 = int_to_ptr.vmem [resolvable:$true] %s5
    %8 = dma.vmem_to_hbm [thread:$0]  %s6, 4096, %s2, [#allocation0]
    %9 = dma.done [#allocation0], 4096
    %10 = vsyncpa [#allocation0], 1
  $region2: #{custom-call.2} parent=0
    #allocation1 [shape = 's32[1]{0}', space=sflag, size = 0x4, scoped, tag = 'scoped memory for custom-call.2']
    %11 = vsyncpa [#allocation1], 0
    %s12 = sshll.u32 %s1, 4
    %s13 = int_to_ptr.vmem [resolvable:$true] %s12
    %15 = dma.vmem_to_hbm [thread:$0]  %s13, 4096, %s3, [#allocation1]
    %16 = dma.done [#allocation1], 4096
    %17 = vsyncpa [#allocation1], 1

// kernel: complex_upsample.1
$region0: #{complex_upsample.1}
  #allocation0 [shape = 'u32[]', space=smem, size = 0x4, offset = 0x4, fixed_abs, tag = 'smem constant byte address 0x4 - core index']
  #allocation1 [shape = 'u32[144,128]{1,0:T(1,128)}', space=vmem, size = 0x12000, scoped, tag = 'internal scratch']
  %s0 = inlined_call_operand.vmem [shape: f32[2,2,16,64], index: 0, kind: input, shape index: {}]
  %s1 = inlined_call_operand.vmem [shape: f32[64,128], index: 1, kind: input, shape index: {}]
  %s2 = inlined_call_operand.vmem [shape: f32[32,16], index: 2, kind: input, shape index: {}]
  %s3 = inlined_call_operand.vmem [shape: f32[64,128], index: 3, kind: input, shape index: {}]
  %s4 = inlined_call_operand.vmem [shape: f32[32,16], index: 4, kind: input, shape index: {}]
  %s5 = inlined_call_operand.vmem [shape: f32[2,2,32,128], index: 5, kind: output, shape index: {}]
  %s6 = sld [smem:[#allocation0]]
  $region53: #{complex_upsample.1} parent=0
    _
  %s8 = ssub.s32 1, %s6
  %s9 = scalar_select 0, %s8, %s6
  loop: start=0, step=1, limit=4
  $region2: #{complex_upsample.1} parent=0 // loop_pre_header
    _
  $region3: #{complex_upsample.1} parent=0 // loop_header
    %s11 = sphi 0, %s15
    %p12 = scmp.ge.s32.totalorder %s11, 4
    %s18 = sphi 0, %s30
    %s19 = sphi 0, %s26
    %s20 = sphi 0, %s18
    %s21 = sphi 0, %s19
    %s22 = sphi 0, %s20
    %s23 = sphi 0, %s21
    %s33 = sphi 0, %s35
    %s36 = sphi 0, %s33
    %s37 = sphi 0, %s36
    %s53 = sphi 0, %s37
    %s57 = sphi 0, %s57
    %s59 = sphi 0, %s57
    %s60 = sphi 0, %s59
    %s74 = sphi 0, %s60
    %s80 = sphi 0, %s82
    %s83 = sphi 0, %s80
    %s84 = sphi 0, %s83
    %s100 = sphi 0, %s84
    %s104 = sphi 0, %s104
    %s106 = sphi 0, %s104
    %s107 = sphi 0, %s106
    %s121 = sphi 0, %s107
    %s127 = sphi 0, %s129
    %s130 = sphi 0, %s127
    %s131 = sphi 0, %s130
    %s147 = sphi 0, %s131
    %s155 = sphi 0, %s157
    %s158 = sphi 0, %s155
    %s159 = sphi 0, %s158
    %s175 = sphi 0, %s159
  $region4: #{complex_upsample.1} parent=0 // loop_header_branch
    %14 = sbr.rel (%p12) target = $region8
  $region5: #{complex_upsample.1} parent=0 // loop_body
    %s16 = ssub.s32 %s11, 1
    %s17 = ssub.s32 %s11, 2
    %s24 = sadd.s32 1, %s19
    %p25 = scmp.ge.s32.totalorder %s24, 1
    %s26 = scalar_select %p25, 0, %s24
    %s27 = sadd.s32 1, %s18
    %s28 = scalar_select %p25, %s27, %s18
    %p29 = scmp.ge.s32.totalorder %s28, 2
    %s30 = scalar_select %p29, 0, %s28
    %s31 = ssub.s32 %s18, %s30
    %p32 = scmp.eq.s32.totalorder %s31, 0
    %s34 = sadd.s32 %s33, 1
    %s35 = scalar_select %p32, %s33, %s34
    %p38 = pneg %p32
    %p39 = scmp.eq.s32.totalorder %s11, 1
    %p40 = por %p38, %p39
    %p41 = scmp.ne.s32.totalorder %s33, %s36
    %p42 = scmp.eq.s32.totalorder %s11, 0
    %p43 = por %p41, %p42
    %p44 = scmp.ne.s32.totalorder %s33, %s36
    %p45 = scmp.eq.s32.totalorder %s16, 1
    %p46 = por %p44, %p45
    %p47 = scmp.ne.s32.totalorder %s36, %s37
    %p48 = scmp.eq.s32.totalorder %s16, 0
    %p49 = por %p47, %p48
    %p50 = scmp.ne.s32.totalorder %s36, %s37
    %p51 = scmp.eq.s32.totalorder %s17, 1
    %p52 = por %p50, %p51
    %p54 = scmp.ne.s32.totalorder %s37, %s53
    %p55 = scmp.eq.s32.totalorder %s17, 0
    %p56 = por %p54, %p55
    %s58 = sadd.s32 %s57, 1
    %p61 = scmp.eq.s32.totalorder %s11, 1
    %p62 = scmp.ne.s32.totalorder %s57, %s59
    %p63 = scmp.eq.s32.totalorder %s11, 0
    %p64 = por %p62, %p63
    %p65 = scmp.ne.s32.totalorder %s57, %s59
    %p66 = scmp.eq.s32.totalorder %s16, 1
    %p67 = por %p65, %p66
    %p68 = scmp.ne.s32.totalorder %s59, %s60
    %p69 = scmp.eq.s32.totalorder %s16, 0
    %p70 = por %p68, %p69
    %p71 = scmp.ne.s32.totalorder %s59, %s60
    %p72 = scmp.eq.s32.totalorder %s17, 1
    %p73 = por %p71, %p72
    %p75 = scmp.ne.s32.totalorder %s60, %s74
    %p76 = scmp.eq.s32.totalorder %s17, 0
    %p77 = por %p75, %p76
    %s78 = ssub.s32 %s19, %s26
    %p79 = scmp.eq.s32.totalorder %s78, 0
    %s81 = sadd.s32 %s80, 1
    %s82 = scalar_select %p79, %s80, %s81
    %p85 = pneg %p79
    %p86 = scmp.eq.s32.totalorder %s11, 1
    %p87 = por %p85, %p86
    %p88 = scmp.ne.s32.totalorder %s80, %s83
    %p89 = scmp.eq.s32.totalorder %s11, 0
    %p90 = por %p88, %p89
    %p91 = scmp.ne.s32.totalorder %s80, %s83
    %p92 = scmp.eq.s32.totalorder %s16, 1
    %p93 = por %p91, %p92
    %p94 = scmp.ne.s32.totalorder %s83, %s84
    %p95 = scmp.eq.s32.totalorder %s16, 0
    %p96 = por %p94, %p95
    %p97 = scmp.ne.s32.totalorder %s83, %s84
    %p98 = scmp.eq.s32.totalorder %s17, 1
    %p99 = por %p97, %p98
    %p101 = scmp.ne.s32.totalorder %s84, %s100
    %p102 = scmp.eq.s32.totalorder %s17, 0
    %p103 = por %p101, %p102
    %s105 = sadd.s32 %s104, 1
    %p108 = scmp.eq.s32.totalorder %s11, 1
    %p109 = scmp.ne.s32.totalorder %s104, %s106
    %p110 = scmp.eq.s32.totalorder %s11, 0
    %p111 = por %p109, %p110
    %p112 = scmp.ne.s32.totalorder %s104, %s106
    %p113 = scmp.eq.s32.totalorder %s16, 1
    %p114 = por %p112, %p113
    %p115 = scmp.ne.s32.totalorder %s106, %s107
    %p116 = scmp.eq.s32.totalorder %s16, 0
    %p117 = por %p115, %p116
    %p118 = scmp.ne.s32.totalorder %s106, %s107
    %p119 = scmp.eq.s32.totalorder %s17, 1
    %p120 = por %p118, %p119
    %p122 = scmp.ne.s32.totalorder %s107, %s121
    %p123 = scmp.eq.s32.totalorder %s17, 0
    %p124 = por %p122, %p123
    %s125 = ssub.s32 %s19, %s26
    %p126 = scmp.eq.s32.totalorder %s125, 0
    %s128 = sadd.s32 %s127, 1
    %s129 = scalar_select %p126, %s127, %s128
    %p132 = pneg %p126
    %p133 = scmp.eq.s32.totalorder %s11, 1
    %p134 = por %p132, %p133
    %p135 = scmp.ne.s32.totalorder %s127, %s130
    %p136 = scmp.eq.s32.totalorder %s11, 0
    %p137 = por %p135, %p136
    %p138 = scmp.ne.s32.totalorder %s127, %s130
    %p139 = scmp.eq.s32.totalorder %s16, 1
    %p140 = por %p138, %p139
    %p141 = scmp.ne.s32.totalorder %s130, %s131
    %p142 = scmp.eq.s32.totalorder %s16, 0
    %p143 = por %p141, %p142
    %p144 = scmp.ne.s32.totalorder %s130, %s131
    %p145 = scmp.eq.s32.totalorder %s17, 1
    %p146 = por %p144, %p145
    %p148 = scmp.ne.s32.totalorder %s131, %s147
    %p149 = scmp.eq.s32.totalorder %s17, 0
    %p150 = por %p148, %p149
    %s151 = ssub.s32 %s18, %s30
    %s152 = ssub.s32 %s19, %s26
    %s153 = sor.u32 %s151, %s152
    %p154 = scmp.eq.s32.totalorder %s153, 0
    %s156 = sadd.s32 %s155, 1
    %s157 = scalar_select %p154, %s155, %s156
    %p160 = pneg %p154
    %p161 = scmp.eq.s32.totalorder %s11, 1
    %p162 = por %p160, %p161
    %p163 = scmp.ne.s32.totalorder %s155, %s158
    %p164 = scmp.eq.s32.totalorder %s11, 0
    %p165 = por %p163, %p164
    %p166 = scmp.ne.s32.totalorder %s155, %s158
    %p167 = scmp.eq.s32.totalorder %s16, 1
    %p168 = por %p166, %p167
    %p169 = scmp.ne.s32.totalorder %s158, %s159
    %p170 = scmp.eq.s32.totalorder %s16, 0
    %p171 = por %p169, %p170
    %p172 = scmp.ne.s32.totalorder %s158, %s159
    %p173 = scmp.eq.s32.totalorder %s17, 1
    %p174 = por %p172, %p173
    %p176 = scmp.ne.s32.totalorder %s159, %s175
    %p177 = scmp.eq.s32.totalorder %s17, 0
    %p178 = por %p176, %p177
    %p179 = scmp.le.s32.totalorder 1, %s11
    %p180 = scmp.lt.s32.totalorder %s11, 3
    %p181 = pnand %p179, %p180
    %p182 = pneg %p181
    // Predicated region
    $region9: #{complex_upsample.1} parent=5 // pred_check
      _
    $region10: #{complex_upsample.1} parent=5 // pred_check_branch
      %184 = sbr.rel (%p181) target = $region12
    $region11: #{complex_upsample.1} parent=5 // pred_region
      %s185 = ssub.s32 %s11, 1
      // Predicated region
      $region13: #{complex_upsample.1} parent=11 // pred_check
        %p186 = pneg %p70
      $region14: #{complex_upsample.1} parent=11 // pred_check_branch
        %188 = sbr.rel (%p186) target = $region16
      $region15: #{complex_upsample.1} parent=11 // pred_region
        _
      $region16: #{complex_upsample.1} parent=11 // pred_fallthru
        _
      // Predicated region
      $region17: #{complex_upsample.1} parent=11 // pred_check
        %p189 = pneg %p96
      $region18: #{complex_upsample.1} parent=11 // pred_check_branch
        %191 = sbr.rel (%p189) target = $region20
      $region19: #{complex_upsample.1} parent=11 // pred_region
        %s192 = smul.u32 4, %s21
        %p193 = scmp.lt.s32.totalorder %s192, 3
        %s194 = scalar_select %p193, %s192, 3
        %s195 = smul.addr %s194, 8
        %s196 = scalar_lea.vmem %s2, %s195
        %s197 = smul.u32 4, %s21
      $region20: #{complex_upsample.1} parent=11 // pred_fallthru
        _
      // Predicated region
      $region21: #{complex_upsample.1} parent=11 // pred_check
        %p198 = pneg %p117
      $region22: #{complex_upsample.1} parent=11 // pred_check_branch
        %200 = sbr.rel (%p198) target = $region24
      $region23: #{complex_upsample.1} parent=11 // pred_region
        _
      $region24: #{complex_upsample.1} parent=11 // pred_fallthru
        _
      // Predicated region
      $region25: #{complex_upsample.1} parent=11 // pred_check
        %p201 = pneg %p143
      $region26: #{complex_upsample.1} parent=11 // pred_check_branch
        %203 = sbr.rel (%p201) target = $region28
      $region27: #{complex_upsample.1} parent=11 // pred_region
        %s204 = smul.u32 4, %s21
        %p205 = scmp.lt.s32.totalorder %s204, 3
        %s206 = scalar_select %p205, %s204, 3
        %s207 = smul.addr %s206, 8
        %s208 = scalar_lea.vmem %s4, %s207
        %s209 = smul.u32 4, %s21
      $region28: #{complex_upsample.1} parent=11 // pred_fallthru
        _
    $region12: #{complex_upsample.1} parent=5 // pred_fallthru
      _
    %p210 = scmp.lt.s32.totalorder %s11, 2
    // Predicated region
    $region29: #{complex_upsample.1} parent=5 // pred_check
      %p211 = pneg %p210
    $region30: #{complex_upsample.1} parent=5 // pred_check_branch
      %213 = sbr.rel (%p211) target = $region32
    $region31: #{complex_upsample.1} parent=5 // pred_region
      // Predicated region
      $region33: #{complex_upsample.1} parent=31 // pred_check
        %p214 = pneg %p43
      $region34: #{complex_upsample.1} parent=31 // pred_check_branch
        %216 = sbr.rel (%p214) target = $region36
      $region35: #{complex_upsample.1} parent=31 // pred_region
        %p217 = scmp.lt.s32.totalorder %s18, 1
        %s218 = scalar_select %p217, %s18, 1
        %s219 = smul.addr %s218, 4
        %s220 = smul.addr %s219, 8
        %s221 = scalar_lea.vmem %s0, %s220
      $region36: #{complex_upsample.1} parent=31 // pred_fallthru
        _
    $region32: #{complex_upsample.1} parent=5 // pred_fallthru
      _
    %p222 = scmp.le.s32.totalorder 1, %s11
    %p223 = scmp.lt.s32.totalorder %s11, 3
    %p224 = pnand %p222, %p223
    %p225 = pneg %p224
    // Predicated region
    $region37: #{complex_upsample.1} parent=5 // pred_check
      _
    $region38: #{complex_upsample.1} parent=5 // pred_check_branch
      %227 = sbr.rel (%p224) target = $region40
    $region39: #{complex_upsample.1} parent=5 // pred_region
      %s228 = ssub.s32 %s11, 1
      %p229 = scmp.lt.s32.totalorder %s20, 1
      %s230 = scalar_select %p229, %s20, 1
      %s231 = smul.addr %s230, 4
      %s232 = smul.addr %s231, 8
      %s233 = scalar_lea.vmem %s0, %s232
      %p234 = pneg %p49
      %p235 = pneg %p46
      %p236 = pneg %p70
      %p237 = pneg %p67
      %s238 = smul.u32 4, %s21
      %p239 = scmp.lt.s32.totalorder %s238, 3
      %s240 = scalar_select %p239, %s238, 3
      %s241 = smul.addr %s240, 8
      %s242 = scalar_lea.vmem %s2, %s241
      %p243 = pneg %p96
      %p244 = pneg %p93
      %p245 = pneg %p117
      %p246 = pneg %p114
      %s247 = smul.u32 4, %s21
      %p248 = scmp.lt.s32.totalorder %s247, 3
      %s249 = scalar_select %p248, %s247, 3
      %s250 = smul.addr %s249, 8
      %s251 = scalar_lea.vmem %s4, %s250
      %p252 = pneg %p143
      %p253 = pneg %p140
      %p254 = pneg %p171
      %p255 = pneg %p168
      %s256 = smul.u32 4, %s21
      %p257 = scmp.lt.s32.totalorder %s20, 1
      %s258 = scalar_select %p257, %s20, 1
      %p259 = scmp.lt.s32.totalorder %s256, 3
      %s260 = scalar_select %p259, %s256, 3
      %s261 = smul.addr %s258, 8
      %s262 = sadd.s32 %s260, %s261
      %s263 = smul.addr %s262, 8
      %s264 = scalar_lea.vmem %s5, %s263
      %p265 = scmp.lt.s32.totalorder %s20, 1
      %s266 = scalar_select %p265, %s20, 1
      %s267 = smul.addr %s266, 4
      %s268 = smul.addr %s267, 8
      %s269 = scalar_lea.vmem %s0, %s268
      %s270 = smul.u32 4, %s21
      %p271 = scmp.lt.s32.totalorder %s270, 3
      %s272 = scalar_select %p271, %s270, 3
      %s273 = smul.addr %s272, 8
      %s274 = scalar_lea.vmem %s2, %s273
      %s275 = smul.u32 4, %s21
      %s276 = smul.u32 4, %s21
      %p277 = scmp.lt.s32.totalorder %s276, 3
      %s278 = scalar_select %p277, %s276, 3
      %s279 = smul.addr %s278, 8
      %s280 = scalar_lea.vmem %s4, %s279
      %s281 = smul.u32 4, %s21
      %s282 = smul.u32 4, %s21
      %p283 = scmp.lt.s32.totalorder %s20, 1
      %s284 = scalar_select %p283, %s20, 1
      %p285 = scmp.lt.s32.totalorder %s282, 3
      %s286 = scalar_select %p285, %s282, 3
      %s287 = smul.addr %s284, 8
      %s288 = sadd.s32 %s286, %s287
      %s289 = smul.addr %s288, 8
      %s290 = scalar_lea.vmem %s5, %s289
      %s291 = smul.u32 4, %s21
      %v292 = vld [vmem:[%s269] sm:$0xff]
      %v293 = vld [vmem:[%s269 + $0x8] sm:$0xff]
      %s294 = scalar_lea.vmem %s269, 16
      %v295 = vld [vmem:[%s294] sm:$0xff]
      %v296 = vld [vmem:[%s294 + $0x8] sm:$0xff]
      %v297 = vadd.f32 %v295, 1e-10
      %v298 = vadd.f32 %v296, 1e-10
      %v299 = vmul.f32 %v292, %v292
      %v300 = vmul.f32 %v293, %v293
      %v301 = vmul.f32 %v297, %v297
      %v302 = vmul.f32 %v298, %v298
      %v303 = vadd.f32 %v299, %v301
      %v304 = vadd.f32 %v300, %v302
      %v305 = vrsqrt.pop %v303
      %v306 = vmul.f32 %v303, %v305
      %vm307 = vcmp.eq.f32.partialorder %v303, inf
      %v308 = vsel %vm307, %v303, %v306
      %vm309 = vcmp.eq.f32.partialorder %v303, 0.0
      %v310 = vand.u32 %v303, 2147483648
      %v311 = vsel %vm309, %v310, %v308
      %v312 = vrsqrt.pop %v304
      %v313 = vmul.f32 %v304, %v312
      %vm314 = vcmp.eq.f32.partialorder %v304, inf
      %v315 = vsel %vm314, %v304, %v313
      %vm316 = vcmp.eq.f32.partialorder %v304, 0.0
      %v317 = vand.u32 %v304, 2147483648
      %v318 = vsel %vm316, %v317, %v315
      %v319 = vand.u32 2147483647, %v292
      %v320 = vand.u32 2147483647, %v297
      %v321 = vmin.f32 %v319, %v320
      %v322 = vmax.f32 %v319, %v320
      %v323 = vrcp.pop %v322
      %v324 = vmul.f32 %v321, %v323
      %v325 = vmul.f32 %v324, %v324
      %v326 = vmul.f32 0.002785687, %v325
      %v327 = vadd.f32 %v326, -0.015866
      %v328 = vmul.f32 %v327, %v325
      %v329 = vadd.f32 %v328, 0.04247222
      %v330 = vmul.f32 %v329, %v325
      %v331 = vadd.f32 %v330, -0.074975304
      %v332 = vmul.f32 %v331, %v325
      %v333 = vadd.f32 %v332, 0.1064488
      %v334 = vmul.f32 %v333, %v325
      %v335 = vadd.f32 %v334, -0.14207031
      %v336 = vmul.f32 %v335, %v325
      %v337 = vadd.f32 %v336, 0.19993454
      %v338 = vmul.f32 %v337, %v325
      %v339 = vadd.f32 %v338, -0.33333147
      %v340 = vmul.f32 %v339, %v325
      %v341 = vmul.f32 %v340, %v324
      %v342 = vadd.f32 %v341, %v324
      %vm343 = vcmp.gt.f32.partialorder %v320, %v319
      %v344 = vsub.f32 1.5707964, %v342
      %v345 = vsel %vm343, %v344, %v342
      %vm346 = vcmp.lt.f32.partialorder %v292, 0.0
      %v347 = vsub.f32 3.1415927, %v345
      %v348 = vsel %vm346, %v347, %v345
      %vm349 = vcmp.lt.s32.totalorder %v292, 0
      %v350 = vsel %vm349, 3.1415927, 0.0
      %vm351 = vcmp.eq.f32.partialorder %v297, 0.0
      %v352 = vsel %vm351, %v350, %v348
      %vm353 = vcmp.ne.f32.partialorder %v292, %v292
      %vm354 = vcmp.ne.f32.partialorder %v297, %v297
      %vm355 = vmor %vm353, %vm354
      %v356 = vsel %vm355, nan, %v352
      %vm357 = vcmp.lt.f32.partialorder %v292, 0.0
      %v358 = vsel %vm357, 2.3561945, 0.7853982
      %vm359 = vcmp.eq.s32.totalorder %v319, inf
      %vm360 = vcmp.eq.s32.totalorder %v320, inf
      %vm361 = vmand %vm359, %vm360
      %v362 = vsel %vm361, %v358, %v356
      %v363 = vand.u32 2147483647, %v362
      %v364 = vand.u32 %v297, 2147483648
      %v365 = vor.u32 %v363, %v364
      %v366 = vand.u32 2147483647, %v293
      %v367 = vand.u32 2147483647, %v298
      %v368 = vmin.f32 %v366, %v367
      %v369 = vmax.f32 %v366, %v367
      %v370 = vrcp.pop %v369
      %v371 = vmul.f32 %v368, %v370
      %v372 = vmul.f32 %v371, %v371
      %v373 = vmul.f32 0.002785687, %v372
      %v374 = vadd.f32 %v373, -0.015866
      %v375 = vmul.f32 %v374, %v372
      %v376 = vadd.f32 %v375, 0.04247222
      %v377 = vmul.f32 %v376, %v372
      %v378 = vadd.f32 %v377, -0.074975304
      %v379 = vmul.f32 %v378, %v372
      %v380 = vadd.f32 %v379, 0.1064488
      %v381 = vmul.f32 %v380, %v372
      %v382 = vadd.f32 %v381, -0.14207031
      %v383 = vmul.f32 %v382, %v372
      %v384 = vadd.f32 %v383, 0.19993454
      %v385 = vmul.f32 %v384, %v372
      %v386 = vadd.f32 %v385, -0.33333147
      %v387 = vmul.f32 %v386, %v372
      %v388 = vmul.f32 %v387, %v371
      %v389 = vadd.f32 %v388, %v371
      %vm390 = vcmp.gt.f32.partialorder %v367, %v366
      %v391 = vsub.f32 1.5707964, %v389
      %v392 = vsel %vm390, %v391, %v389
      %vm393 = vcmp.lt.f32.partialorder %v293, 0.0
      %v394 = vsub.f32 3.1415927, %v392
      %v395 = vsel %vm393, %v394, %v392
      %vm396 = vcmp.lt.s32.totalorder %v293, 0
      %v397 = vsel %vm396, 3.1415927, 0.0
      %vm398 = vcmp.eq.f32.partialorder %v298, 0.0
      %v399 = vsel %vm398, %v397, %v395
      %vm400 = vcmp.ne.f32.partialorder %v293, %v293
      %vm401 = vcmp.ne.f32.partialorder %v298, %v298
      %vm402 = vmor %vm400, %vm401
      %v403 = vsel %vm402, nan, %v399
      %vm404 = vcmp.lt.f32.partialorder %v293, 0.0
      %v405 = vsel %vm404, 2.3561945, 0.7853982
      %vm406 = vcmp.eq.s32.totalorder %v366, inf
      %vm407 = vcmp.eq.s32.totalorder %v367, inf
      %vm408 = vmand %vm406, %vm407
      %v409 = vsel %vm408, %v405, %v403
      %v410 = vand.u32 2147483647, %v409
      %v411 = vand.u32 %v298, 2147483648
      %v412 = vor.u32 %v410, %v411
      %v413 = vld [vmem:[%s1] sm:$0xff]
      %v414 = vld [vmem:[%s1 + $0x8] sm:$0xff]
      %v415 = vld [vmem:[%s1 + $0x10] sm:$0xff]
      %v416 = vld [vmem:[%s1 + $0x18] sm:$0xff]
      %v417 = vld [vmem:[%s1 + $0x20] sm:$0xff]
      %v418 = vld [vmem:[%s1 + $0x28] sm:$0xff]
      %v419 = vld [vmem:[%s1 + $0x30] sm:$0xff]
      %v420 = vld [vmem:[%s1 + $0x38] sm:$0xff]
      %vm421 = vcmask 523264
      %v423 = vsel %vm421, %v311, 0
      %v426 = vsel %vm421, %v318, 0
      %428 = vmatprep.subr.mxu0 0.0
      %429 = vmatpush1.msra.mxu0 0.0
      %430 = vmatprep.subr.mxu0 0.0
      %431 = vmatpush1.msra.mxu0 0.0
      %432 = vmatprep.subr.mxu0 0.0
      %433 = vmatpush1.msra.mxu0 0.0
      %434 = vmatprep.subr.mxu0 0.0
      %435 = vmatpush1.msra.mxu0 0.0
      %436 = vmatprep.subr.mxu0 0.0
      %437 = vmatpush1.msra.mxu0 0.0
      %438 = vmatprep.subr.mxu0 0.0
      %439 = vmatpush1.msra.mxu0 0.0
      %440 = vmatprep.subr.mxu0 0.0
      %441 = vmatpush1.msra.mxu0 0.0
      %442 = vmatprep.subr.mxu0 0.0
      %443 = vmatpush1.msra.mxu0 0.0
      %444 = vmatprep.subr.mxu0 0.0
      %445 = vmatpush1.msra.mxu0 %v420
      %446 = vmatprep.subr.mxu0 0.0
      %447 = vmatpush1.msra.mxu0 %v419
      %448 = vmatprep.subr.mxu0 0.0
      %449 = vmatpush1.msra.mxu0 %v418
      %450 = vmatprep.subr.mxu0 0.0
      %451 = vmatpush1.msra.mxu0 %v417
      %452 = vmatprep.subr.mxu0 0.0
      %453 = vmatpush1.msra.mxu0 %v416
      %454 = vmatprep.subr.mxu0 0.0
      %455 = vmatpush1.msra.mxu0 %v415
      %456 = vmatprep.subr.mxu0 0.0
      %457 = vmatpush1.msra.mxu0 %v414
      %458 = vmatprep.subr.mxu0 0.0
      %459 = vmatpush1.msra.mxu0 %v413
      %460 = vmatprep.subr.mxu0 0.0
      %461 = vmatpush2.msra.mxu0 0.0
      %462 = vmatprep.subr.mxu0 0.0
      %463 = vmatpush2.msra.mxu0 0.0
      %464 = vmatprep.subr.mxu0 0.0
      %465 = vmatpush2.msra.mxu0 0.0
      %466 = vmatprep.subr.mxu0 0.0
      %467 = vmatpush2.msra.mxu0 0.0
      %468 = vmatprep.subr.mxu0 0.0
      %469 = vmatpush2.msra.mxu0 0.0
      %470 = vmatprep.subr.mxu0 0.0
      %471 = vmatpush2.msra.mxu0 0.0
      %472 = vmatprep.subr.mxu0 0.0
      %473 = vmatpush2.msra.mxu0 0.0
      %474 = vmatprep.subr.mxu0 0.0
      %475 = vmatpush2.msra.mxu0 0.0
      %476 = vmatprep.subr.mxu0 0.0
      %477 = vmatpush2.msra.mxu0 0.0
      %478 = vmatprep.subr.mxu0 0.0
      %479 = vmatpush2.msra.mxu0 0.0
      %480 = vmatprep.subr.mxu0 0.0
      %481 = vmatpush2.msra.mxu0 0.0
      %482 = vmatprep.subr.mxu0 0.0
      %483 = vmatpush2.msra.mxu0 0.0
      %484 = vmatprep.subr.mxu0 0.0
      %485 = vmatpush2.msra.mxu0 0.0
      %486 = vmatprep.subr.mxu0 0.0
      %487 = vmatpush2.msra.mxu0 0.0
      %488 = vmatprep.subr.mxu0 0.0
      %489 = vmatpush2.msra.mxu0 0.0
      %490 = vmatprep.subr.mxu0 0.0
      %491 = vmatpush2.msra.mxu0 0.0
      %492 = vmatprep.mubr.f32.mxu0 0.0
      %493 = vmatmul.mubr.f32.gmra.mxu0 %v423
      %v494 = vpop.f32.mrf.mxu0
      %v495 = vadd.f32 0.0, %v494
      %v496 = vpop.f32.mrf.mxu0
      %497 = vmatprep.mubr.f32.mxu0 0.0
      %498 = vmatmul.mubr.f32.gmra.mxu0 %v426
      %v499 = vpop.f32.mrf.mxu0
      %v500 = vadd.f32 0.0, %v499
      %v501 = vpop.f32.mrf.mxu0
      %502 = vdwg.mxu0
      %v503 = vld [vmem:[%s3] sm:$0xff]
      %v504 = vld [vmem:[%s3 + $0x8] sm:$0xff]
      %v505 = vld [vmem:[%s3 + $0x10] sm:$0xff]
      %v506 = vld [vmem:[%s3 + $0x18] sm:$0xff]
      %v507 = vld [vmem:[%s3 + $0x20] sm:$0xff]
      %v508 = vld [vmem:[%s3 + $0x28] sm:$0xff]
      %v509 = vld [vmem:[%s3 + $0x30] sm:$0xff]
      %v510 = vld [vmem:[%s3 + $0x38] sm:$0xff]
      %v512 = vsel %vm421, %v365, 0
      %v515 = vsel %vm421, %v412, 0
      %517 = vmatprep.subr.mxu0 0.0
      %518 = vmatpush1.msra.mxu0 0.0
      %519 = vmatprep.subr.mxu0 0.0
      %520 = vmatpush1.msra.mxu0 0.0
      %521 = vmatprep.subr.mxu0 0.0
      %522 = vmatpush1.msra.mxu0 0.0
      %523 = vmatprep.subr.mxu0 0.0
      %524 = vmatpush1.msra.mxu0 0.0
      %525 = vmatprep.subr.mxu0 0.0
      %526 = vmatpush1.msra.mxu0 0.0
      %527 = vmatprep.subr.mxu0 0.0
      %528 = vmatpush1.msra.mxu0 0.0
      %529 = vmatprep.subr.mxu0 0.0
      %530 = vmatpush1.msra.mxu0 0.0
      %531 = vmatprep.subr.mxu0 0.0
      %532 = vmatpush1.msra.mxu0 0.0
      %533 = vmatprep.subr.mxu0 0.0
      %534 = vmatpush1.msra.mxu0 %v510
      %535 = vmatprep.subr.mxu0 0.0
      %536 = vmatpush1.msra.mxu0 %v509
      %537 = vmatprep.subr.mxu0 0.0
      %538 = vmatpush1.msra.mxu0 %v508
      %539 = vmatprep.subr.mxu0 0.0
      %540 = vmatpush1.msra.mxu0 %v507
      %541 = vmatprep.subr.mxu0 0.0
      %542 = vmatpush1.msra.mxu0 %v506
      %543 = vmatprep.subr.mxu0 0.0
      %544 = vmatpush1.msra.mxu0 %v505
      %545 = vmatprep.subr.mxu0 0.0
      %546 = vmatpush1.msra.mxu0 %v504
      %547 = vmatprep.subr.mxu0 0.0
      %548 = vmatpush1.msra.mxu0 %v503
      %549 = vmatprep.subr.mxu0 0.0
      %550 = vmatpush2.msra.mxu0 0.0
      %551 = vmatprep.subr.mxu0 0.0
      %552 = vmatpush2.msra.mxu0 0.0
      %553 = vmatprep.subr.mxu0 0.0
      %554 = vmatpush2.msra.mxu0 0.0
      %555 = vmatprep.subr.mxu0 0.0
      %556 = vmatpush2.msra.mxu0 0.0
      %557 = vmatprep.subr.mxu0 0.0
      %558 = vmatpush2.msra.mxu0 0.0
      %559 = vmatprep.subr.mxu0 0.0
      %560 = vmatpush2.msra.mxu0 0.0
      %561 = vmatprep.subr.mxu0 0.0
      %562 = vmatpush2.msra.mxu0 0.0
      %563 = vmatprep.subr.mxu0 0.0
      %564 = vmatpush2.msra.mxu0 0.0
      %565 = vmatprep.subr.mxu0 0.0
      %566 = vmatpush2.msra.mxu0 0.0
      %567 = vmatprep.subr.mxu0 0.0
      %568 = vmatpush2.msra.mxu0 0.0
      %569 = vmatprep.subr.mxu0 0.0
      %570 = vmatpush2.msra.mxu0 0.0
      %571 = vmatprep.subr.mxu0 0.0
      %572 = vmatpush2.msra.mxu0 0.0
      %573 = vmatprep.subr.mxu0 0.0
      %574 = vmatpush2.msra.mxu0 0.0
      %575 = vmatprep.subr.mxu0 0.0
      %576 = vmatpush2.msra.mxu0 0.0
      %577 = vmatprep.subr.mxu0 0.0
      %578 = vmatpush2.msra.mxu0 0.0
      %579 = vmatprep.subr.mxu0 0.0
      %580 = vmatpush2.msra.mxu0 0.0
      %581 = vmatprep.mubr.f32.mxu0 0.0
      %582 = vmatmul.mubr.f32.gmra.mxu0 %v512
      %v583 = vpop.f32.mrf.mxu0
      %v584 = vadd.f32 0.0, %v583
      %v585 = vpop.f32.mrf.mxu0
      %586 = vmatprep.mubr.f32.mxu0 0.0
      %587 = vmatmul.mubr.f32.gmra.mxu0 %v515
      %v588 = vpop.f32.mrf.mxu0
      %v589 = vadd.f32 0.0, %v588
      %v590 = vpop.f32.mrf.mxu0
      %591 = vdwg.mxu0
      %v592 = vld [vmem:[%s274] sm:$0xff]
      %v593 = vld [vmem:[%s274 + $0x8] sm:$0xff]
      %v594 = vld [vmem:[%s274 + $0x10] sm:$0xff]
      %v595 = vld [vmem:[%s274 + $0x18] sm:$0xff]
      %vm596 = vcmask 130048
      %v598 = vsel %vm596, %v592, 0
      %v601 = vsel %vm596, %v593, 0
      %v604 = vsel %vm596, %v594, 0
      %v607 = vsel %vm596, %v595, 0
      %609 = vmatprep.subr.mxu0 0.0
      %610 = vmatpush1.msra.mxu0 0.0
      %611 = vmatprep.subr.mxu0 0.0
      %612 = vmatpush1.msra.mxu0 0.0
      %613 = vmatprep.subr.mxu0 0.0
      %614 = vmatpush1.msra.mxu0 0.0
      %615 = vmatprep.subr.mxu0 0.0
      %616 = vmatpush1.msra.mxu0 0.0
      %617 = vmatprep.subr.mxu0 0.0
      %618 = vmatpush1.msra.mxu0 0.0
      %619 = vmatprep.subr.mxu0 0.0
      %620 = vmatpush1.msra.mxu0 0.0
      %621 = vmatprep.subr.mxu0 0.0
      %622 = vmatpush1.msra.mxu0 0.0
      %623 = vmatprep.subr.mxu0 0.0
      %624 = vmatpush1.msra.mxu0 0.0
      %625 = vmatprep.subr.mxu0 0.0
      %626 = vmatpush1.msra.mxu0 0.0
      %627 = vmatprep.subr.mxu0 0.0
      %628 = vmatpush1.msra.mxu0 0.0
      %629 = vmatprep.subr.mxu0 0.0
      %630 = vmatpush1.msra.mxu0 0.0
      %631 = vmatprep.subr.mxu0 0.0
      %632 = vmatpush1.msra.mxu0 0.0
      %633 = vmatprep.subr.mxu0 0.0
      %634 = vmatpush1.msra.mxu0 0.0
      %635 = vmatprep.subr.mxu0 0.0
      %636 = vmatpush1.msra.mxu0 0.0
      %637 = vmatprep.subr.mxu0 0.0
      %638 = vmatpush1.msra.mxu0 %v500
      %639 = vmatprep.subr.mxu0 0.0
      %640 = vmatpush1.msra.mxu0 %v495
      %641 = vmatprep.subr.mxu0 0.0
      %642 = vmatpush2.msra.mxu0 0.0
      %643 = vmatprep.subr.mxu0 0.0
      %644 = vmatpush2.msra.mxu0 0.0
      %645 = vmatprep.subr.mxu0 0.0
      %646 = vmatpush2.msra.mxu0 0.0
      %647 = vmatprep.subr.mxu0 0.0
      %648 = vmatpush2.msra.mxu0 0.0
      %649 = vmatprep.subr.mxu0 0.0
      %650 = vmatpush2.msra.mxu0 0.0
      %651 = vmatprep.subr.mxu0 0.0
      %652 = vmatpush2.msra.mxu0 0.0
      %653 = vmatprep.subr.mxu0 0.0
      %654 = vmatpush2.msra.mxu0 0.0
      %655 = vmatprep.subr.mxu0 0.0
      %656 = vmatpush2.msra.mxu0 0.0
      %657 = vmatprep.subr.mxu0 0.0
      %658 = vmatpush2.msra.mxu0 0.0
      %659 = vmatprep.subr.mxu0 0.0
      %660 = vmatpush2.msra.mxu0 0.0
      %661 = vmatprep.subr.mxu0 0.0
      %662 = vmatpush2.msra.mxu0 0.0
      %663 = vmatprep.subr.mxu0 0.0
      %664 = vmatpush2.msra.mxu0 0.0
      %665 = vmatprep.subr.mxu0 0.0
      %666 = vmatpush2.msra.mxu0 0.0
      %667 = vmatprep.subr.mxu0 0.0
      %668 = vmatpush2.msra.mxu0 0.0
      %669 = vmatprep.subr.mxu0 0.0
      %670 = vmatpush2.msra.mxu0 0.0
      %671 = vmatprep.subr.mxu0 0.0
      %672 = vmatpush2.msra.mxu0 0.0
      %673 = vmatprep.mubr.f32.mxu0 0.0
      %674 = vmatmul.mubr.f32.gmra.mxu0 %v598
      %v675 = vpop.f32.mrf.mxu0
      %v676 = vadd.f32 0.0, %v675
      %v677 = vpop.f32.mrf.mxu0
      %678 = vmatprep.mubr.f32.mxu0 0.0
      %679 = vmatmul.mubr.f32.gmra.mxu0 %v601
      %v680 = vpop.f32.mrf.mxu0
      %v681 = vadd.f32 0.0, %v680
      %v682 = vpop.f32.mrf.mxu0
      %683 = vmatprep.mubr.f32.mxu0 0.0
      %684 = vmatmul.mubr.f32.gmra.mxu0 %v604
      %v685 = vpop.f32.mrf.mxu0
      %v686 = vadd.f32 0.0, %v685
      %v687 = vpop.f32.mrf.mxu0
      %688 = vmatprep.mubr.f32.mxu0 0.0
      %689 = vmatmul.mubr.f32.gmra.mxu0 %v607
      %v690 = vpop.f32.mrf.mxu0
      %v691 = vadd.f32 0.0, %v690
      %v692 = vpop.f32.mrf.mxu0
      %693 = vdwg.mxu0
      %v694 = vld [vmem:[%s280] sm:$0xff]
      %v695 = vld [vmem:[%s280 + $0x8] sm:$0xff]
      %v696 = vld [vmem:[%s280 + $0x10] sm:$0xff]
      %v697 = vld [vmem:[%s280 + $0x18] sm:$0xff]
      %v699 = vsel %vm596, %v694, 0
      %v702 = vsel %vm596, %v695, 0
      %v705 = vsel %vm596, %v696, 0
      %v708 = vsel %vm596, %v697, 0
      %710 = vmatprep.subr.mxu0 0.0
      %711 = vmatpush1.msra.mxu0 0.0
      %712 = vmatprep.subr.mxu0 0.0
      %713 = vmatpush1.msra.mxu0 0.0
      %714 = vmatprep.subr.mxu0 0.0
      %715 = vmatpush1.msra.mxu0 0.0
      %716 = vmatprep.subr.mxu0 0.0
      %717 = vmatpush1.msra.mxu0 0.0
      %718 = vmatprep.subr.mxu0 0.0
      %719 = vmatpush1.msra.mxu0 0.0
      %720 = vmatprep.subr.mxu0 0.0
      %721 = vmatpush1.msra.mxu0 0.0
      %722 = vmatprep.subr.mxu0 0.0
      %723 = vmatpush1.msra.mxu0 0.0
      %724 = vmatprep.subr.mxu0 0.0
      %725 = vmatpush1.msra.mxu0 0.0
      %726 = vmatprep.subr.mxu0 0.0
      %727 = vmatpush1.msra.mxu0 0.0
      %728 = vmatprep.subr.mxu0 0.0
      %729 = vmatpush1.msra.mxu0 0.0
      %730 = vmatprep.subr.mxu0 0.0
      %731 = vmatpush1.msra.mxu0 0.0
      %732 = vmatprep.subr.mxu0 0.0
      %733 = vmatpush1.msra.mxu0 0.0
      %734 = vmatprep.subr.mxu0 0.0
      %735 = vmatpush1.msra.mxu0 0.0
      %736 = vmatprep.subr.mxu0 0.0
      %737 = vmatpush1.msra.mxu0 0.0
      %738 = vmatprep.subr.mxu0 0.0
      %739 = vmatpush1.msra.mxu0 %v589
      %740 = vmatprep.subr.mxu0 0.0
      %741 = vmatpush1.msra.mxu0 %v584
      %742 = vmatprep.subr.mxu0 0.0
      %743 = vmatpush2.msra.mxu0 0.0
      %744 = vmatprep.subr.mxu0 0.0
      %745 = vmatpush2.msra.mxu0 0.0
      %746 = vmatprep.subr.mxu0 0.0
      %747 = vmatpush2.msra.mxu0 0.0
      %748 = vmatprep.subr.mxu0 0.0
      %749 = vmatpush2.msra.mxu0 0.0
      %750 = vmatprep.subr.mxu0 0.0
      %751 = vmatpush2.msra.mxu0 0.0
      %752 = vmatprep.subr.mxu0 0.0
      %753 = vmatpush2.msra.mxu0 0.0
      %754 = vmatprep.subr.mxu0 0.0
      %755 = vmatpush2.msra.mxu0 0.0
      %756 = vmatprep.subr.mxu0 0.0
      %757 = vmatpush2.msra.mxu0 0.0
      %758 = vmatprep.subr.mxu0 0.0
      %759 = vmatpush2.msra.mxu0 0.0
      %760 = vmatprep.subr.mxu0 0.0
      %761 = vmatpush2.msra.mxu0 0.0
      %762 = vmatprep.subr.mxu0 0.0
      %763 = vmatpush2.msra.mxu0 0.0
      %764 = vmatprep.subr.mxu0 0.0
      %765 = vmatpush2.msra.mxu0 0.0
      %766 = vmatprep.subr.mxu0 0.0
      %767 = vmatpush2.msra.mxu0 0.0
      %768 = vmatprep.subr.mxu0 0.0
      %769 = vmatpush2.msra.mxu0 0.0
      %770 = vmatprep.subr.mxu0 0.0
      %771 = vmatpush2.msra.mxu0 0.0
      %772 = vmatprep.subr.mxu0 0.0
      %773 = vmatpush2.msra.mxu0 0.0
      %774 = vmatprep.mubr.f32.mxu0 0.0
      %775 = vmatmul.mubr.f32.gmra.mxu0 %v699
      %v776 = vpop.f32.mrf.mxu0
      %v777 = vadd.f32 0.0, %v776
      %v778 = vpop.f32.mrf.mxu0
      %779 = vmatprep.mubr.f32.mxu0 0.0
      %780 = vmatmul.mubr.f32.gmra.mxu0 %v702
      %v781 = vpop.f32.mrf.mxu0
      %v782 = vadd.f32 0.0, %v781
      %v783 = vpop.f32.mrf.mxu0
      %784 = vmatprep.mubr.f32.mxu0 0.0
      %785 = vmatmul.mubr.f32.gmra.mxu0 %v705
      %v786 = vpop.f32.mrf.mxu0
      %v787 = vadd.f32 0.0, %v786
      %v788 = vpop.f32.mrf.mxu0
      %789 = vmatprep.mubr.f32.mxu0 0.0
      %790 = vmatmul.mubr.f32.gmra.mxu0 %v708
      %v791 = vpop.f32.mrf.mxu0
      %v792 = vadd.f32 0.0, %v791
      %v793 = vpop.f32.mrf.mxu0
      %794 = vdwg.mxu0
      %v795 = vand.u32 2147483647, %v777
      %vm796 = vcmp.le.f32.partialorder %v795, 0.7853982
      %vm797 = vcmp.lt.s32.totalorder %v777, 0
      %v798 = vand.u32 %v777, 2139095040
      %v799 = vshrl.u32 %v798, 23
      %v800 = vsub.s32 %v799, 127
      %v801 = vand.u32 2147483647, %v777
      %v802 = vand.u32 %v801, 8388607
      %v803 = vor.u32 %v802, 8388608
      %v804 = vsub.s32 0, %v803
      %v805 = vadd.s32 %v800, 1
      %vm806 = vcmp.gt.s32.totalorder %v805, 0
      %v807 = vsel %vm806, %v805, 0
      %v808 = vshrl.u32 %v807, 5
      %v809 = vand.u32 %v807, 31
      %v810 = vsub.s32 32, %v809
      %v811 = vshrl.u32 683565275, %v810
      %v812 = vshll.u32 683565275, %v809
      %v813 = vshrl.u32 2475754826, %v810
      %v814 = vor.u32 %v812, %v813
      %v815 = vshll.u32 2475754826, %v809
      %v816 = vshrl.u32 2131351028, %v810
      %v817 = vor.u32 %v815, %v816
      %v818 = vshll.u32 2131351028, %v809
      %v819 = vshrl.u32 2102212464, %v810
      %v820 = vor.u32 %v818, %v819
      %v821 = vshll.u32 2102212464, %v809
      %v822 = vshrl.u32 920167782, %v810
      %v823 = vor.u32 %v821, %v822
      %v824 = vshll.u32 920167782, %v809
      %v825 = vshrl.u32 1326507024, %v810
      %v826 = vor.u32 %v824, %v825
      %vm827 = vcmp.lt.s32.totalorder %v808, 1
      %vm828 = vcmp.lt.s32.totalorder %v808, 2
      %vm829 = vcmp.lt.s32.totalorder %v808, 3
      %vm830 = vcmp.lt.s32.totalorder %v808, 4
      %v831 = vsel %vm827, %v811, %v814
      %v832 = vsel %vm830, %v820, 2102212464
      %v833 = vsel %vm829, %v817, %v832
      %v834 = vsel %vm828, %v831, %v833
      %v835 = vsel %vm827, %v814, %v817
      %v836 = vsel %vm830, %v823, 920167782
      %v837 = vsel %vm829, %v820, %v836
      %v838 = vsel %vm828, %v835, %v837
      %v839 = vsel %vm827, %v817, %v820
      %v840 = vsel %vm830, %v826, 1326507024
      %v841 = vsel %vm829, %v823, %v840
      %v842 = vsel %vm828, %v839, %v841
      %v843 = vshll.u32 %v803, 8
      %v844 = vmul.u32.u64.compose %v843, %v842
      %v845 = vextract.low.u32 %v844
      %v846 = vextract.high.u32 %v844
      %v847 = vmul.u32.u64.compose %v843, %v838
      %v848 = vextract.low.u32 %v847
      %v849 = vextract.high.u32 %v847
      %v850 = vmul.u32 %v843, %v834
      %v851 = vadd.s32 %v846, %v848
      %vm852 = vc.u32 %v846, %v848
      %v853 = vadd.s32 %v849, 1
      %v854 = vsel %vm852, %v853, %v849
      %v855 = vadd.s32 %v850, %v854
      %v856 = vadd.s32 %v855, 536870912
      %v857 = vshrl.u32 %v856, 30
      %v858 = vshll.u32 %v857, 30
      %v859 = vsub.s32 %v855, %v858
      %vm860 = vcmp.lt.s32.totalorder %v859, 0
      %v861 = vsub.s32 0, %v859
      %v862 = vsel %vm860, %v861, %v859
      %v863 = vclz %v862
      %v864 = vsub.s32 %v863, 2
      %vm865 = vcmp.gt.s32.totalorder 0, %v864
      %v866 = vsel %vm865, 0, %v864
      %v867 = vsub.s32 32, %v866
      %v868 = vshll.u32 %v859, %v866
      %v869 = vshrl.u32 %v851, %v867
      %v870 = vor.u32 %v868, %v869
      %v871 = vsub.s32 4294967266, %v866
      %v872 = vadd.s32 %v871, 127
      %v873 = vshll.u32 %v872, 23
      %v874 = vor.u32 4788187, %v873
      %v875 = vand.u32 2147483647, %v874
      %v877 = vcvt.s32.f32 %v870
      %v878 = vmul.f32 %v877, %v875
      %v879 = vxor.u32 %v878, 2147483648
      %v880 = vsel %vm797, %v879, %v878
      %v881 = vsub.s32 4, %v857
      %v882 = vsel %vm797, %v881, %v857
      %v883 = vsel %vm796, %v777, %v880
      %v884 = vsel %vm796, 0, %v882
      %v885 = vcosq.f32.pop %v883
      %v886 = vsinq.f32.pop %v883
      %vm887 = vweird.f32 %v777
      %v888 = vand.u32 %v884, 3
      %vm889 = vcmp.lt.s32.totalorder %v888, 2
      %vm890 = vcmp.eq.s32.totalorder %v888, 0
      %v891 = vxor.u32 %v886, 2147483648
      %v892 = vsel %vm890, %v885, %v891
      %vm893 = vcmp.eq.s32.totalorder %v888, 2
      %v894 = vxor.u32 %v885, 2147483648
      %v895 = vsel %vm893, %v894, %v886
      %v896 = vsel %vm889, %v892, %v895
      %v897 = vsel %vm887, nan, %v896
      %v898 = vand.u32 2147483647, %v782
      %vm899 = vcmp.le.f32.partialorder %v898, 0.7853982
      %vm900 = vcmp.lt.s32.totalorder %v782, 0
      %v901 = vand.u32 %v782, 2139095040
      %v902 = vshrl.u32 %v901, 23
      %v903 = vsub.s32 %v902, 127
      %v904 = vand.u32 2147483647, %v782
      %v905 = vand.u32 %v904, 8388607
      %v906 = vor.u32 %v905, 8388608
      %v907 = vsub.s32 0, %v906
      %v908 = vadd.s32 %v903, 1
      %vm909 = vcmp.gt.s32.totalorder %v908, 0
      %v910 = vsel %vm909, %v908, 0
      %v911 = vshrl.u32 %v910, 5
      %v912 = vand.u32 %v910, 31
      %v913 = vsub.s32 32, %v912
      %v914 = vshrl.u32 683565275, %v913
      %v915 = vshll.u32 683565275, %v912
      %v916 = vshrl.u32 2475754826, %v913
      %v917 = vor.u32 %v915, %v916
      %v918 = vshll.u32 2475754826, %v912
      %v919 = vshrl.u32 2131351028, %v913
      %v920 = vor.u32 %v918, %v919
      %v921 = vshll.u32 2131351028, %v912
      %v922 = vshrl.u32 2102212464, %v913
      %v923 = vor.u32 %v921, %v922
      %v924 = vshll.u32 2102212464, %v912
      %v925 = vshrl.u32 920167782, %v913
      %v926 = vor.u32 %v924, %v925
      %v927 = vshll.u32 920167782, %v912
      %v928 = vshrl.u32 1326507024, %v913
      %v929 = vor.u32 %v927, %v928
      %vm930 = vcmp.lt.s32.totalorder %v911, 1
      %vm931 = vcmp.lt.s32.totalorder %v911, 2
      %vm932 = vcmp.lt.s32.totalorder %v911, 3
      %vm933 = vcmp.lt.s32.totalorder %v911, 4
      %v934 = vsel %vm930, %v914, %v917
      %v935 = vsel %vm933, %v923, 2102212464
      %v936 = vsel %vm932, %v920, %v935
      %v937 = vsel %vm931, %v934, %v936
      %v938 = vsel %vm930, %v917, %v920
      %v939 = vsel %vm933, %v926, 920167782
      %v940 = vsel %vm932, %v923, %v939
      %v941 = vsel %vm931, %v938, %v940
      %v942 = vsel %vm930, %v920, %v923
      %v943 = vsel %vm933, %v929, 1326507024
      %v944 = vsel %vm932, %v926, %v943
      %v945 = vsel %vm931, %v942, %v944
      %v946 = vshll.u32 %v906, 8
      %v947 = vmul.u32.u64.compose %v946, %v945
      %v948 = vextract.low.u32 %v947
      %v949 = vextract.high.u32 %v947
      %v950 = vmul.u32.u64.compose %v946, %v941
      %v951 = vextract.low.u32 %v950
      %v952 = vextract.high.u32 %v950
      %v953 = vmul.u32 %v946, %v937
      %v954 = vadd.s32 %v949, %v951
      %vm955 = vc.u32 %v949, %v951
      %v956 = vadd.s32 %v952, 1
      %v957 = vsel %vm955, %v956, %v952
      %v958 = vadd.s32 %v953, %v957
      %v959 = vadd.s32 %v958, 536870912
      %v960 = vshrl.u32 %v959, 30
      %v961 = vshll.u32 %v960, 30
      %v962 = vsub.s32 %v958, %v961
      %vm963 = vcmp.lt.s32.totalorder %v962, 0
      %v964 = vsub.s32 0, %v962
      %v965 = vsel %vm963, %v964, %v962
      %v966 = vclz %v965
      %v967 = vsub.s32 %v966, 2
      %vm968 = vcmp.gt.s32.totalorder 0, %v967
      %v969 = vsel %vm968, 0, %v967
      %v970 = vsub.s32 32, %v969
      %v971 = vshll.u32 %v962, %v969
      %v972 = vshrl.u32 %v954, %v970
      %v973 = vor.u32 %v971, %v972
      %v974 = vsub.s32 4294967266, %v969
      %v975 = vadd.s32 %v974, 127
      %v976 = vshll.u32 %v975, 23
      %v977 = vor.u32 4788187, %v976
      %v978 = vand.u32 2147483647, %v977
      %v980 = vcvt.s32.f32 %v973
      %v981 = vmul.f32 %v980, %v978
      %v982 = vxor.u32 %v981, 2147483648
      %v983 = vsel %vm900, %v982, %v981
      %v984 = vsub.s32 4, %v960
      %v985 = vsel %vm900, %v984, %v960
      %v986 = vsel %vm899, %v782, %v983
      %v987 = vsel %vm899, 0, %v985
      %v988 = vcosq.f32.pop %v986
      %v989 = vsinq.f32.pop %v986
      %vm990 = vweird.f32 %v782
      %v991 = vand.u32 %v987, 3
      %vm992 = vcmp.lt.s32.totalorder %v991, 2
      %vm993 = vcmp.eq.s32.totalorder %v991, 0
      %v994 = vxor.u32 %v989, 2147483648
      %v995 = vsel %vm993, %v988, %v994
      %vm996 = vcmp.eq.s32.totalorder %v991, 2
      %v997 = vxor.u32 %v988, 2147483648
      %v998 = vsel %vm996, %v997, %v989
      %v999 = vsel %vm992, %v995, %v998
      %v1000 = vsel %vm990, nan, %v999
      %v1001 = vand.u32 2147483647, %v787
      %vm1002 = vcmp.le.f32.partialorder %v1001, 0.7853982
      %vm1003 = vcmp.lt.s32.totalorder %v787, 0
      %v1004 = vand.u32 %v787, 2139095040
      %v1005 = vshrl.u32 %v1004, 23
      %v1006 = vsub.s32 %v1005, 127
      %v1007 = vand.u32 2147483647, %v787
      %v1008 = vand.u32 %v1007, 8388607
      %v1009 = vor.u32 %v1008, 8388608
      %v1010 = vsub.s32 0, %v1009
      %v1011 = vadd.s32 %v1006, 1
      %vm1012 = vcmp.gt.s32.totalorder %v1011, 0
      %v1013 = vsel %vm1012, %v1011, 0
      %v1014 = vshrl.u32 %v1013, 5
      %v1015 = vand.u32 %v1013, 31
      %v1016 = vsub.s32 32, %v1015
      %v1017 = vshrl.u32 683565275, %v1016
      %v1018 = vshll.u32 683565275, %v1015
      %v1019 = vshrl.u32 2475754826, %v1016
      %v1020 = vor.u32 %v1018, %v1019
      %v1021 = vshll.u32 2475754826, %v1015
      %v1022 = vshrl.u32 2131351028, %v1016
      %v1023 = vor.u32 %v1021, %v1022
      %v1024 = vshll.u32 2131351028, %v1015
      %v1025 = vshrl.u32 2102212464, %v1016
      %v1026 = vor.u32 %v1024, %v1025
      %v1027 = vshll.u32 2102212464, %v1015
      %v1028 = vshrl.u32 920167782, %v1016
      %v1029 = vor.u32 %v1027, %v1028
      %v1030 = vshll.u32 920167782, %v1015
      %v1031 = vshrl.u32 1326507024, %v1016
      %v1032 = vor.u32 %v1030, %v1031
      %vm1033 = vcmp.lt.s32.totalorder %v1014, 1
      %vm1034 = vcmp.lt.s32.totalorder %v1014, 2
      %vm1035 = vcmp.lt.s32.totalorder %v1014, 3
      %vm1036 = vcmp.lt.s32.totalorder %v1014, 4
      %v1037 = vsel %vm1033, %v1017, %v1020
      %v1038 = vsel %vm1036, %v1026, 2102212464
      %v1039 = vsel %vm1035, %v1023, %v1038
      %v1040 = vsel %vm1034, %v1037, %v1039
      %v1041 = vsel %vm1033, %v1020, %v1023
      %v1042 = vsel %vm1036, %v1029, 920167782
      %v1043 = vsel %vm1035, %v1026, %v1042
      %v1044 = vsel %vm1034, %v1041, %v1043
      %v1045 = vsel %vm1033, %v1023, %v1026
      %v1046 = vsel %vm1036, %v1032, 1326507024
      %v1047 = vsel %vm1035, %v1029, %v1046
      %v1048 = vsel %vm1034, %v1045, %v1047
      %v1049 = vshll.u32 %v1009, 8
      %v1050 = vmul.u32.u64.compose %v1049, %v1048
      %v1051 = vextract.low.u32 %v1050
      %v1052 = vextract.high.u32 %v1050
      %v1053 = vmul.u32.u64.compose %v1049, %v1044
      %v1054 = vextract.low.u32 %v1053
      %v1055 = vextract.high.u32 %v1053
      %v1056 = vmul.u32 %v1049, %v1040
      %v1057 = vadd.s32 %v1052, %v1054
      %vm1058 = vc.u32 %v1052, %v1054
      %v1059 = vadd.s32 %v1055, 1
      %v1060 = vsel %vm1058, %v1059, %v1055
      %v1061 = vadd.s32 %v1056, %v1060
      %v1062 = vadd.s32 %v1061, 536870912
      %v1063 = vshrl.u32 %v1062, 30
      %v1064 = vshll.u32 %v1063, 30
      %v1065 = vsub.s32 %v1061, %v1064
      %vm1066 = vcmp.lt.s32.totalorder %v1065, 0
      %v1067 = vsub.s32 0, %v1065
      %v1068 = vsel %vm1066, %v1067, %v1065
      %v1069 = vclz %v1068
      %v1070 = vsub.s32 %v1069, 2
      %vm1071 = vcmp.gt.s32.totalorder 0, %v1070
      %v1072 = vsel %vm1071, 0, %v1070
      %v1073 = vsub.s32 32, %v1072
      %v1074 = vshll.u32 %v1065, %v1072
      %v1075 = vshrl.u32 %v1057, %v1073
      %v1076 = vor.u32 %v1074, %v1075
      %v1077 = vsub.s32 4294967266, %v1072
      %v1078 = vadd.s32 %v1077, 127
      %v1079 = vshll.u32 %v1078, 23
      %v1080 = vor.u32 4788187, %v1079
      %v1081 = vand.u32 2147483647, %v1080
      %v1083 = vcvt.s32.f32 %v1076
      %v1084 = vmul.f32 %v1083, %v1081
      %v1085 = vxor.u32 %v1084, 2147483648
      %v1086 = vsel %vm1003, %v1085, %v1084
      %v1087 = vsub.s32 4, %v1063
      %v1088 = vsel %vm1003, %v1087, %v1063
      %v1089 = vsel %vm1002, %v787, %v1086
      %v1090 = vsel %vm1002, 0, %v1088
      %v1091 = vcosq.f32.pop %v1089
      %v1092 = vsinq.f32.pop %v1089
      %vm1093 = vweird.f32 %v787
      %v1094 = vand.u32 %v1090, 3
      %vm1095 = vcmp.lt.s32.totalorder %v1094, 2
      %vm1096 = vcmp.eq.s32.totalorder %v1094, 0
      %v1097 = vxor.u32 %v1092, 2147483648
      %v1098 = vsel %vm1096, %v1091, %v1097
      %vm1099 = vcmp.eq.s32.totalorder %v1094, 2
      %v1100 = vxor.u32 %v1091, 2147483648
      %v1101 = vsel %vm1099, %v1100, %v1092
      %v1102 = vsel %vm1095, %v1098, %v1101
      %v1103 = vsel %vm1093, nan, %v1102
      %v1104 = vand.u32 2147483647, %v792
      %vm1105 = vcmp.le.f32.partialorder %v1104, 0.7853982
      %vm1106 = vcmp.lt.s32.totalorder %v792, 0
      %v1107 = vand.u32 %v792, 2139095040
      %v1108 = vshrl.u32 %v1107, 23
      %v1109 = vsub.s32 %v1108, 127
      %v1110 = vand.u32 2147483647, %v792
      %v1111 = vand.u32 %v1110, 8388607
      %v1112 = vor.u32 %v1111, 8388608
      %v1113 = vsub.s32 0, %v1112
      %v1114 = vadd.s32 %v1109, 1
      %vm1115 = vcmp.gt.s32.totalorder %v1114, 0
      %v1116 = vsel %vm1115, %v1114, 0
      %v1117 = vshrl.u32 %v1116, 5
      %v1118 = vand.u32 %v1116, 31
      %v1119 = vsub.s32 32, %v1118
      %v1120 = vshrl.u32 683565275, %v1119
      %v1121 = vshll.u32 683565275, %v1118
      %v1122 = vshrl.u32 2475754826, %v1119
      %v1123 = vor.u32 %v1121, %v1122
      %v1124 = vshll.u32 2475754826, %v1118
      %v1125 = vshrl.u32 2131351028, %v1119
      %v1126 = vor.u32 %v1124, %v1125
      %v1127 = vshll.u32 2131351028, %v1118
      %v1128 = vshrl.u32 2102212464, %v1119
      %v1129 = vor.u32 %v1127, %v1128
      %v1130 = vshll.u32 2102212464, %v1118
      %v1131 = vshrl.u32 920167782, %v1119
      %v1132 = vor.u32 %v1130, %v1131
      %v1133 = vshll.u32 920167782, %v1118
      %v1134 = vshrl.u32 1326507024, %v1119
      %v1135 = vor.u32 %v1133, %v1134
      %vm1136 = vcmp.lt.s32.totalorder %v1117, 1
      %vm1137 = vcmp.lt.s32.totalorder %v1117, 2
      %vm1138 = vcmp.lt.s32.totalorder %v1117, 3
      %vm1139 = vcmp.lt.s32.totalorder %v1117, 4
      %v1140 = vsel %vm1136, %v1120, %v1123
      %v1141 = vsel %vm1139, %v1129, 2102212464
      %v1142 = vsel %vm1138, %v1126, %v1141
      %v1143 = vsel %vm1137, %v1140, %v1142
      %v1144 = vsel %vm1136, %v1123, %v1126
      %v1145 = vsel %vm1139, %v1132, 920167782
      %v1146 = vsel %vm1138, %v1129, %v1145
      %v1147 = vsel %vm1137, %v1144, %v1146
      %v1148 = vsel %vm1136, %v1126, %v1129
      %v1149 = vsel %vm1139, %v1135, 1326507024
      %v1150 = vsel %vm1138, %v1132, %v1149
      %v1151 = vsel %vm1137, %v1148, %v1150
      %v1152 = vshll.u32 %v1112, 8
      %v1153 = vmul.u32.u64.compose %v1152, %v1151
      %v1154 = vextract.low.u32 %v1153
      %v1155 = vextract.high.u32 %v1153
      %v1156 = vmul.u32.u64.compose %v1152, %v1147
      %v1157 = vextract.low.u32 %v1156
      %v1158 = vextract.high.u32 %v1156
      %v1159 = vmul.u32 %v1152, %v1143
      %v1160 = vadd.s32 %v1155, %v1157
      %vm1161 = vc.u32 %v1155, %v1157
      %v1162 = vadd.s32 %v1158, 1
      %v1163 = vsel %vm1161, %v1162, %v1158
      %v1164 = vadd.s32 %v1159, %v1163
      %v1165 = vadd.s32 %v1164, 536870912
      %v1166 = vshrl.u32 %v1165, 30
      %v1167 = vshll.u32 %v1166, 30
      %v1168 = vsub.s32 %v1164, %v1167
      %vm1169 = vcmp.lt.s32.totalorder %v1168, 0
      %v1170 = vsub.s32 0, %v1168
      %v1171 = vsel %vm1169, %v1170, %v1168
      %v1172 = vclz %v1171
      %v1173 = vsub.s32 %v1172, 2
      %vm1174 = vcmp.gt.s32.totalorder 0, %v1173
      %v1175 = vsel %vm1174, 0, %v1173
      %v1176 = vsub.s32 32, %v1175
      %v1177 = vshll.u32 %v1168, %v1175
      %v1178 = vshrl.u32 %v1160, %v1176
      %v1179 = vor.u32 %v1177, %v1178
      %v1180 = vsub.s32 4294967266, %v1175
      %v1181 = vadd.s32 %v1180, 127
      %v1182 = vshll.u32 %v1181, 23
      %v1183 = vor.u32 4788187, %v1182
      %v1184 = vand.u32 2147483647, %v1183
      %v1186 = vcvt.s32.f32 %v1179
      %v1187 = vmul.f32 %v1186, %v1184
      %v1188 = vxor.u32 %v1187, 2147483648
      %v1189 = vsel %vm1106, %v1188, %v1187
      %v1190 = vsub.s32 4, %v1166
      %v1191 = vsel %vm1106, %v1190, %v1166
      %v1192 = vsel %vm1105, %v792, %v1189
      %v1193 = vsel %vm1105, 0, %v1191
      %v1194 = vcosq.f32.pop %v1192
      %v1195 = vsinq.f32.pop %v1192
      %vm1196 = vweird.f32 %v792
      %v1197 = vand.u32 %v1193, 3
      %vm1198 = vcmp.lt.s32.totalorder %v1197, 2
      %vm1199 = vcmp.eq.s32.totalorder %v1197, 0
      %v1200 = vxor.u32 %v1195, 2147483648
      %v1201 = vsel %vm1199, %v1194, %v1200
      %vm1202 = vcmp.eq.s32.totalorder %v1197, 2
      %v1203 = vxor.u32 %v1194, 2147483648
      %v1204 = vsel %vm1202, %v1203, %v1195
      %v1205 = vsel %vm1198, %v1201, %v1204
      %v1206 = vsel %vm1196, nan, %v1205
      %v1207 = vmul.f32 %v676, %v897
      %v1208 = vmul.f32 %v681, %v1000
      %v1209 = vmul.f32 %v686, %v1103
      %v1210 = vmul.f32 %v691, %v1206
      %1211 = vst [vmem:[%s290] sm:$0xff] %v1207
      %1212 = vst [vmem:[%s290 + $0x8] sm:$0xff] %v1208
      %1213 = vst [vmem:[%s290 + $0x10] sm:$0xff] %v1209
      %1214 = vst [vmem:[%s290 + $0x18] sm:$0xff] %v1210
      %v1215 = vand.u32 2147483647, %v777
      %vm1216 = vcmp.le.f32.partialorder %v1215, 0.7853982
      %vm1217 = vcmp.lt.s32.totalorder %v777, 0
      %v1218 = vand.u32 %v777, 2139095040
      %v1219 = vshrl.u32 %v1218, 23
      %v1220 = vsub.s32 %v1219, 127
      %v1221 = vand.u32 2147483647, %v777
      %v1222 = vand.u32 %v1221, 8388607
      %v1223 = vor.u32 %v1222, 8388608
      %v1224 = vsub.s32 0, %v1223
      %v1225 = vadd.s32 %v1220, 1
      %vm1226 = vcmp.gt.s32.totalorder %v1225, 0
      %v1227 = vsel %vm1226, %v1225, 0
      %v1228 = vshrl.u32 %v1227, 5
      %v1229 = vand.u32 %v1227, 31
      %v1230 = vsub.s32 32, %v1229
      %v1231 = vshrl.u32 683565275, %v1230
      %v1232 = vshll.u32 683565275, %v1229
      %v1233 = vshrl.u32 2475754826, %v1230
      %v1234 = vor.u32 %v1232, %v1233
      %v1235 = vshll.u32 2475754826, %v1229
      %v1236 = vshrl.u32 2131351028, %v1230
      %v1237 = vor.u32 %v1235, %v1236
      %v1238 = vshll.u32 2131351028, %v1229
      %v1239 = vshrl.u32 2102212464, %v1230
      %v1240 = vor.u32 %v1238, %v1239
      %v1241 = vshll.u32 2102212464, %v1229
      %v1242 = vshrl.u32 920167782, %v1230
      %v1243 = vor.u32 %v1241, %v1242
      %v1244 = vshll.u32 920167782, %v1229
      %v1245 = vshrl.u32 1326507024, %v1230
      %v1246 = vor.u32 %v1244, %v1245
      %vm1247 = vcmp.lt.s32.totalorder %v1228, 1
      %vm1248 = vcmp.lt.s32.totalorder %v1228, 2
      %vm1249 = vcmp.lt.s32.totalorder %v1228, 3
      %vm1250 = vcmp.lt.s32.totalorder %v1228, 4
      %v1251 = vsel %vm1247, %v1231, %v1234
      %v1252 = vsel %vm1250, %v1240, 2102212464
      %v1253 = vsel %vm1249, %v1237, %v1252
      %v1254 = vsel %vm1248, %v1251, %v1253
      %v1255 = vsel %vm1247, %v1234, %v1237
      %v1256 = vsel %vm1250, %v1243, 920167782
      %v1257 = vsel %vm1249, %v1240, %v1256
      %v1258 = vsel %vm1248, %v1255, %v1257
      %v1259 = vsel %vm1247, %v1237, %v1240
      %v1260 = vsel %vm1250, %v1246, 1326507024
      %v1261 = vsel %vm1249, %v1243, %v1260
      %v1262 = vsel %vm1248, %v1259, %v1261
      %v1263 = vshll.u32 %v1223, 8
      %v1264 = vmul.u32.u64.compose %v1263, %v1262
      %v1265 = vextract.low.u32 %v1264
      %v1266 = vextract.high.u32 %v1264
      %v1267 = vmul.u32.u64.compose %v1263, %v1258
      %v1268 = vextract.low.u32 %v1267
      %v1269 = vextract.high.u32 %v1267
      %v1270 = vmul.u32 %v1263, %v1254
      %v1271 = vadd.s32 %v1266, %v1268
      %vm1272 = vc.u32 %v1266, %v1268
      %v1273 = vadd.s32 %v1269, 1
      %v1274 = vsel %vm1272, %v1273, %v1269
      %v1275 = vadd.s32 %v1270, %v1274
      %v1276 = vadd.s32 %v1275, 536870912
      %v1277 = vshrl.u32 %v1276, 30
      %v1278 = vshll.u32 %v1277, 30
      %v1279 = vsub.s32 %v1275, %v1278
      %vm1280 = vcmp.lt.s32.totalorder %v1279, 0
      %v1281 = vsub.s32 0, %v1279
      %v1282 = vsel %vm1280, %v1281, %v1279
      %v1283 = vclz %v1282
      %v1284 = vsub.s32 %v1283, 2
      %vm1285 = vcmp.gt.s32.totalorder 0, %v1284
      %v1286 = vsel %vm1285, 0, %v1284
      %v1287 = vsub.s32 32, %v1286
      %v1288 = vshll.u32 %v1279, %v1286
      %v1289 = vshrl.u32 %v1271, %v1287
      %v1290 = vor.u32 %v1288, %v1289
      %v1291 = vsub.s32 4294967266, %v1286
      %v1292 = vadd.s32 %v1291, 127
      %v1293 = vshll.u32 %v1292, 23
      %v1294 = vor.u32 4788187, %v1293
      %v1295 = vand.u32 2147483647, %v1294
      %v1297 = vcvt.s32.f32 %v1290
      %v1298 = vmul.f32 %v1297, %v1295
      %v1299 = vxor.u32 %v1298, 2147483648
      %v1300 = vsel %vm1217, %v1299, %v1298
      %v1301 = vsub.s32 4, %v1277
      %v1302 = vsel %vm1217, %v1301, %v1277
      %v1303 = vsel %vm1216, %v777, %v1300
      %v1304 = vsel %vm1216, 0, %v1302
      %v1305 = vcosq.f32.pop %v1303
      %v1306 = vsinq.f32.pop %v1303
      %vm1307 = vweird.f32 %v777
      %v1308 = vadd.s32 %v1304, 3
      %v1309 = vand.u32 %v1308, 3
      %vm1310 = vcmp.lt.s32.totalorder %v1309, 2
      %vm1311 = vcmp.eq.s32.totalorder %v1309, 0
      %v1312 = vxor.u32 %v1306, 2147483648
      %v1313 = vsel %vm1311, %v1305, %v1312
      %vm1314 = vcmp.eq.s32.totalorder %v1309, 2
      %v1315 = vxor.u32 %v1305, 2147483648
      %v1316 = vsel %vm1314, %v1315, %v1306
      %v1317 = vsel %vm1310, %v1313, %v1316
      %v1318 = vsel %vm1307, nan, %v1317
      %v1319 = vand.u32 2147483647, %v782
      %vm1320 = vcmp.le.f32.partialorder %v1319, 0.7853982
      %vm1321 = vcmp.lt.s32.totalorder %v782, 0
      %v1322 = vand.u32 %v782, 2139095040
      %v1323 = vshrl.u32 %v1322, 23
      %v1324 = vsub.s32 %v1323, 127
      %v1325 = vand.u32 2147483647, %v782
      %v1326 = vand.u32 %v1325, 8388607
      %v1327 = vor.u32 %v1326, 8388608
      %v1328 = vsub.s32 0, %v1327
      %v1329 = vadd.s32 %v1324, 1
      %vm1330 = vcmp.gt.s32.totalorder %v1329, 0
      %v1331 = vsel %vm1330, %v1329, 0
      %v1332 = vshrl.u32 %v1331, 5
      %v1333 = vand.u32 %v1331, 31
      %v1334 = vsub.s32 32, %v1333
      %v1335 = vshrl.u32 683565275, %v1334
      %v1336 = vshll.u32 683565275, %v1333
      %v1337 = vshrl.u32 2475754826, %v1334
      %v1338 = vor.u32 %v1336, %v1337
      %v1339 = vshll.u32 2475754826, %v1333
      %v1340 = vshrl.u32 2131351028, %v1334
      %v1341 = vor.u32 %v1339, %v1340
      %v1342 = vshll.u32 2131351028, %v1333
      %v1343 = vshrl.u32 2102212464, %v1334
      %v1344 = vor.u32 %v1342, %v1343
      %v1345 = vshll.u32 2102212464, %v1333
      %v1346 = vshrl.u32 920167782, %v1334
      %v1347 = vor.u32 %v1345, %v1346
      %v1348 = vshll.u32 920167782, %v1333
      %v1349 = vshrl.u32 1326507024, %v1334
      %v1350 = vor.u32 %v1348, %v1349
      %vm1351 = vcmp.lt.s32.totalorder %v1332, 1
      %vm1352 = vcmp.lt.s32.totalorder %v1332, 2
      %vm1353 = vcmp.lt.s32.totalorder %v1332, 3
      %vm1354 = vcmp.lt.s32.totalorder %v1332, 4
      %v1355 = vsel %vm1351, %v1335, %v1338
      %v1356 = vsel %vm1354, %v1344, 2102212464
      %v1357 = vsel %vm1353, %v1341, %v1356
      %v1358 = vsel %vm1352, %v1355, %v1357
      %v1359 = vsel %vm1351, %v1338, %v1341
      %v1360 = vsel %vm1354, %v1347, 920167782
      %v1361 = vsel %vm1353, %v1344, %v1360
      %v1362 = vsel %vm1352, %v1359, %v1361
      %v1363 = vsel %vm1351, %v1341, %v1344
      %v1364 = vsel %vm1354, %v1350, 1326507024
      %v1365 = vsel %vm1353, %v1347, %v1364
      %v1366 = vsel %vm1352, %v1363, %v1365
      %v1367 = vshll.u32 %v1327, 8
      %v1368 = vmul.u32.u64.compose %v1367, %v1366
      %v1369 = vextract.low.u32 %v1368
      %v1370 = vextract.high.u32 %v1368
      %v1371 = vmul.u32.u64.compose %v1367, %v1362
      %v1372 = vextract.low.u32 %v1371
      %v1373 = vextract.high.u32 %v1371
      %v1374 = vmul.u32 %v1367, %v1358
      %v1375 = vadd.s32 %v1370, %v1372
      %vm1376 = vc.u32 %v1370, %v1372
      %v1377 = vadd.s32 %v1373, 1
      %v1378 = vsel %vm1376, %v1377, %v1373
      %v1379 = vadd.s32 %v1374, %v1378
      %v1380 = vadd.s32 %v1379, 536870912
      %v1381 = vshrl.u32 %v1380, 30
      %v1382 = vshll.u32 %v1381, 30
      %v1383 = vsub.s32 %v1379, %v1382
      %vm1384 = vcmp.lt.s32.totalorder %v1383, 0
      %v1385 = vsub.s32 0, %v1383
      %v1386 = vsel %vm1384, %v1385, %v1383
      %v1387 = vclz %v1386
      %v1388 = vsub.s32 %v1387, 2
      %vm1389 = vcmp.gt.s32.totalorder 0, %v1388
      %v1390 = vsel %vm1389, 0, %v1388
      %v1391 = vsub.s32 32, %v1390
      %v1392 = vshll.u32 %v1383, %v1390
      %v1393 = vshrl.u32 %v1375, %v1391
      %v1394 = vor.u32 %v1392, %v1393
      %v1395 = vsub.s32 4294967266, %v1390
      %v1396 = vadd.s32 %v1395, 127
      %v1397 = vshll.u32 %v1396, 23
      %v1398 = vor.u32 4788187, %v1397
      %v1399 = vand.u32 2147483647, %v1398
      %v1401 = vcvt.s32.f32 %v1394
      %v1402 = vmul.f32 %v1401, %v1399
      %v1403 = vxor.u32 %v1402, 2147483648
      %v1404 = vsel %vm1321, %v1403, %v1402
      %v1405 = vsub.s32 4, %v1381
      %v1406 = vsel %vm1321, %v1405, %v1381
      %v1407 = vsel %vm1320, %v782, %v1404
      %v1408 = vsel %vm1320, 0, %v1406
      %v1409 = vcosq.f32.pop %v1407
      %v1410 = vsinq.f32.pop %v1407
      %vm1411 = vweird.f32 %v782
      %v1412 = vadd.s32 %v1408, 3
      %v1413 = vand.u32 %v1412, 3
      %vm1414 = vcmp.lt.s32.totalorder %v1413, 2
      %vm1415 = vcmp.eq.s32.totalorder %v1413, 0
      %v1416 = vxor.u32 %v1410, 2147483648
      %v1417 = vsel %vm1415, %v1409, %v1416
      %vm1418 = vcmp.eq.s32.totalorder %v1413, 2
      %v1419 = vxor.u32 %v1409, 2147483648
      %v1420 = vsel %vm1418, %v1419, %v1410
      %v1421 = vsel %vm1414, %v1417, %v1420
      %v1422 = vsel %vm1411, nan, %v1421
      %v1423 = vand.u32 2147483647, %v787
      %vm1424 = vcmp.le.f32.partialorder %v1423, 0.7853982
      %vm1425 = vcmp.lt.s32.totalorder %v787, 0
      %v1426 = vand.u32 %v787, 2139095040
      %v1427 = vshrl.u32 %v1426, 23
      %v1428 = vsub.s32 %v1427, 127
      %v1429 = vand.u32 2147483647, %v787
      %v1430 = vand.u32 %v1429, 8388607
      %v1431 = vor.u32 %v1430, 8388608
      %v1432 = vsub.s32 0, %v1431
      %v1433 = vadd.s32 %v1428, 1
      %vm1434 = vcmp.gt.s32.totalorder %v1433, 0
      %v1435 = vsel %vm1434, %v1433, 0
      %v1436 = vshrl.u32 %v1435, 5
      %v1437 = vand.u32 %v1435, 31
      %v1438 = vsub.s32 32, %v1437
      %v1439 = vshrl.u32 683565275, %v1438
      %v1440 = vshll.u32 683565275, %v1437
      %v1441 = vshrl.u32 2475754826, %v1438
      %v1442 = vor.u32 %v1440, %v1441
      %v1443 = vshll.u32 2475754826, %v1437
      %v1444 = vshrl.u32 2131351028, %v1438
      %v1445 = vor.u32 %v1443, %v1444
      %v1446 = vshll.u32 2131351028, %v1437
      %v1447 = vshrl.u32 2102212464, %v1438
      %v1448 = vor.u32 %v1446, %v1447
      %v1449 = vshll.u32 2102212464, %v1437
      %v1450 = vshrl.u32 920167782, %v1438
      %v1451 = vor.u32 %v1449, %v1450
      %v1452 = vshll.u32 920167782, %v1437
      %v1453 = vshrl.u32 1326507024, %v1438
      %v1454 = vor.u32 %v1452, %v1453
      %vm1455 = vcmp.lt.s32.totalorder %v1436, 1
      %vm1456 = vcmp.lt.s32.totalorder %v1436, 2
      %vm1457 = vcmp.lt.s32.totalorder %v1436, 3
      %vm1458 = vcmp.lt.s32.totalorder %v1436, 4
      %v1459 = vsel %vm1455, %v1439, %v1442
      %v1460 = vsel %vm1458, %v1448, 2102212464
      %v1461 = vsel %vm1457, %v1445, %v1460
      %v1462 = vsel %vm1456, %v1459, %v1461
      %v1463 = vsel %vm1455, %v1442, %v1445
      %v1464 = vsel %vm1458, %v1451, 920167782
      %v1465 = vsel %vm1457, %v1448, %v1464
      %v1466 = vsel %vm1456, %v1463, %v1465
      %v1467 = vsel %vm1455, %v1445, %v1448
      %v1468 = vsel %vm1458, %v1454, 1326507024
      %v1469 = vsel %vm1457, %v1451, %v1468
      %v1470 = vsel %vm1456, %v1467, %v1469
      %v1471 = vshll.u32 %v1431, 8
      %v1472 = vmul.u32.u64.compose %v1471, %v1470
      %v1473 = vextract.low.u32 %v1472
      %v1474 = vextract.high.u32 %v1472
      %v1475 = vmul.u32.u64.compose %v1471, %v1466
      %v1476 = vextract.low.u32 %v1475
      %v1477 = vextract.high.u32 %v1475
      %v1478 = vmul.u32 %v1471, %v1462
      %v1479 = vadd.s32 %v1474, %v1476
      %vm1480 = vc.u32 %v1474, %v1476
      %v1481 = vadd.s32 %v1477, 1
      %v1482 = vsel %vm1480, %v1481, %v1477
      %v1483 = vadd.s32 %v1478, %v1482
      %v1484 = vadd.s32 %v1483, 536870912
      %v1485 = vshrl.u32 %v1484, 30
      %v1486 = vshll.u32 %v1485, 30
      %v1487 = vsub.s32 %v1483, %v1486
      %vm1488 = vcmp.lt.s32.totalorder %v1487, 0
      %v1489 = vsub.s32 0, %v1487
      %v1490 = vsel %vm1488, %v1489, %v1487
      %v1491 = vclz %v1490
      %v1492 = vsub.s32 %v1491, 2
      %vm1493 = vcmp.gt.s32.totalorder 0, %v1492
      %v1494 = vsel %vm1493, 0, %v1492
      %v1495 = vsub.s32 32, %v1494
      %v1496 = vshll.u32 %v1487, %v1494
      %v1497 = vshrl.u32 %v1479, %v1495
      %v1498 = vor.u32 %v1496, %v1497
      %v1499 = vsub.s32 4294967266, %v1494
      %v1500 = vadd.s32 %v1499, 127
      %v1501 = vshll.u32 %v1500, 23
      %v1502 = vor.u32 4788187, %v1501
      %v1503 = vand.u32 2147483647, %v1502
      %v1505 = vcvt.s32.f32 %v1498
      %v1506 = vmul.f32 %v1505, %v1503
      %v1507 = vxor.u32 %v1506, 2147483648
      %v1508 = vsel %vm1425, %v1507, %v1506
      %v1509 = vsub.s32 4, %v1485
      %v1510 = vsel %vm1425, %v1509, %v1485
      %v1511 = vsel %vm1424, %v787, %v1508
      %v1512 = vsel %vm1424, 0, %v1510
      %v1513 = vcosq.f32.pop %v1511
      %v1514 = vsinq.f32.pop %v1511
      %vm1515 = vweird.f32 %v787
      %v1516 = vadd.s32 %v1512, 3
      %v1517 = vand.u32 %v1516, 3
      %vm1518 = vcmp.lt.s32.totalorder %v1517, 2
      %vm1519 = vcmp.eq.s32.totalorder %v1517, 0
      %v1520 = vxor.u32 %v1514, 2147483648
      %v1521 = vsel %vm1519, %v1513, %v1520
      %vm1522 = vcmp.eq.s32.totalorder %v1517, 2
      %v1523 = vxor.u32 %v1513, 2147483648
      %v1524 = vsel %vm1522, %v1523, %v1514
      %v1525 = vsel %vm1518, %v1521, %v1524
      %v1526 = vsel %vm1515, nan, %v1525
      %v1527 = vand.u32 2147483647, %v792
      %vm1528 = vcmp.le.f32.partialorder %v1527, 0.7853982
      %vm1529 = vcmp.lt.s32.totalorder %v792, 0
      %v1530 = vand.u32 %v792, 2139095040
      %v1531 = vshrl.u32 %v1530, 23
      %v1532 = vsub.s32 %v1531, 127
      %v1533 = vand.u32 2147483647, %v792
      %v1534 = vand.u32 %v1533, 8388607
      %v1535 = vor.u32 %v1534, 8388608
      %v1536 = vsub.s32 0, %v1535
      %v1537 = vadd.s32 %v1532, 1
      %vm1538 = vcmp.gt.s32.totalorder %v1537, 0
      %v1539 = vsel %vm1538, %v1537, 0
      %v1540 = vshrl.u32 %v1539, 5
      %v1541 = vand.u32 %v1539, 31
      %v1542 = vsub.s32 32, %v1541
      %v1543 = vshrl.u32 683565275, %v1542
      %v1544 = vshll.u32 683565275, %v1541
      %v1545 = vshrl.u32 2475754826, %v1542
      %v1546 = vor.u32 %v1544, %v1545
      %v1547 = vshll.u32 2475754826, %v1541
      %v1548 = vshrl.u32 2131351028, %v1542
      %v1549 = vor.u32 %v1547, %v1548
      %v1550 = vshll.u32 2131351028, %v1541
      %v1551 = vshrl.u32 2102212464, %v1542
      %v1552 = vor.u32 %v1550, %v1551
      %v1553 = vshll.u32 2102212464, %v1541
      %v1554 = vshrl.u32 920167782, %v1542
      %v1555 = vor.u32 %v1553, %v1554
      %v1556 = vshll.u32 920167782, %v1541
      %v1557 = vshrl.u32 1326507024, %v1542
      %v1558 = vor.u32 %v1556, %v1557
      %vm1559 = vcmp.lt.s32.totalorder %v1540, 1
      %vm1560 = vcmp.lt.s32.totalorder %v1540, 2
      %vm1561 = vcmp.lt.s32.totalorder %v1540, 3
      %vm1562 = vcmp.lt.s32.totalorder %v1540, 4
      %v1563 = vsel %vm1559, %v1543, %v1546
      %v1564 = vsel %vm1562, %v1552, 2102212464
      %v1565 = vsel %vm1561, %v1549, %v1564
      %v1566 = vsel %vm1560, %v1563, %v1565
      %v1567 = vsel %vm1559, %v1546, %v1549
      %v1568 = vsel %vm1562, %v1555, 920167782
      %v1569 = vsel %vm1561, %v1552, %v1568
      %v1570 = vsel %vm1560, %v1567, %v1569
      %v1571 = vsel %vm1559, %v1549, %v1552
      %v1572 = vsel %vm1562, %v1558, 1326507024
      %v1573 = vsel %vm1561, %v1555, %v1572
      %v1574 = vsel %vm1560, %v1571, %v1573
      %v1575 = vshll.u32 %v1535, 8
      %v1576 = vmul.u32.u64.compose %v1575, %v1574
      %v1577 = vextract.low.u32 %v1576
      %v1578 = vextract.high.u32 %v1576
      %v1579 = vmul.u32.u64.compose %v1575, %v1570
      %v1580 = vextract.low.u32 %v1579
      %v1581 = vextract.high.u32 %v1579
      %v1582 = vmul.u32 %v1575, %v1566
      %v1583 = vadd.s32 %v1578, %v1580
      %vm1584 = vc.u32 %v1578, %v1580
      %v1585 = vadd.s32 %v1581, 1
      %v1586 = vsel %vm1584, %v1585, %v1581
      %v1587 = vadd.s32 %v1582, %v1586
      %v1588 = vadd.s32 %v1587, 536870912
      %v1589 = vshrl.u32 %v1588, 30
      %v1590 = vshll.u32 %v1589, 30
      %v1591 = vsub.s32 %v1587, %v1590
      %vm1592 = vcmp.lt.s32.totalorder %v1591, 0
      %v1593 = vsub.s32 0, %v1591
      %v1594 = vsel %vm1592, %v1593, %v1591
      %v1595 = vclz %v1594
      %v1596 = vsub.s32 %v1595, 2
      %vm1597 = vcmp.gt.s32.totalorder 0, %v1596
      %v1598 = vsel %vm1597, 0, %v1596
      %v1599 = vsub.s32 32, %v1598
      %v1600 = vshll.u32 %v1591, %v1598
      %v1601 = vshrl.u32 %v1583, %v1599
      %v1602 = vor.u32 %v1600, %v1601
      %v1603 = vsub.s32 4294967266, %v1598
      %v1604 = vadd.s32 %v1603, 127
      %v1605 = vshll.u32 %v1604, 23
      %v1606 = vor.u32 4788187, %v1605
      %v1607 = vand.u32 2147483647, %v1606
      %v1609 = vcvt.s32.f32 %v1602
      %v1610 = vmul.f32 %v1609, %v1607
      %v1611 = vxor.u32 %v1610, 2147483648
      %v1612 = vsel %vm1529, %v1611, %v1610
      %v1613 = vsub.s32 4, %v1589
      %v1614 = vsel %vm1529, %v1613, %v1589
      %v1615 = vsel %vm1528, %v792, %v1612
      %v1616 = vsel %vm1528, 0, %v1614
      %v1617 = vcosq.f32.pop %v1615
      %v1618 = vsinq.f32.pop %v1615
      %vm1619 = vweird.f32 %v792
      %v1620 = vadd.s32 %v1616, 3
      %v1621 = vand.u32 %v1620, 3
      %vm1622 = vcmp.lt.s32.totalorder %v1621, 2
      %vm1623 = vcmp.eq.s32.totalorder %v1621, 0
      %v1624 = vxor.u32 %v1618, 2147483648
      %v1625 = vsel %vm1623, %v1617, %v1624
      %vm1626 = vcmp.eq.s32.totalorder %v1621, 2
      %v1627 = vxor.u32 %v1617, 2147483648
      %v1628 = vsel %vm1626, %v1627, %v1618
      %v1629 = vsel %vm1622, %v1625, %v1628
      %v1630 = vsel %vm1619, nan, %v1629
      %v1631 = vmul.f32 %v676, %v1318
      %v1632 = vmul.f32 %v681, %v1422
      %v1633 = vmul.f32 %v686, %v1526
      %v1634 = vmul.f32 %v691, %v1630
      %s1635 = scalar_lea.vmem %s290, 32
      %1636 = vst [vmem:[%s1635] sm:$0xff] %v1631
      %1637 = vst [vmem:[%s1635 + $0x8] sm:$0xff] %v1632
      %1638 = vst [vmem:[%s1635 + $0x10] sm:$0xff] %v1633
      %1639 = vst [vmem:[%s1635 + $0x18] sm:$0xff] %v1634
      %s1640 = smul.u32 4, %s21
      %p1641 = scmp.lt.s32.totalorder %s20, 1
      %s1642 = scalar_select %p1641, %s20, 1
      %p1643 = scmp.lt.s32.totalorder %s1640, 3
      %s1644 = scalar_select %p1643, %s1640, 3
      %s1645 = smul.addr %s1642, 8
      %s1646 = sadd.s32 %s1644, %s1645
      %s1647 = smul.addr %s1646, 8
      %s1648 = scalar_lea.vmem %s5, %s1647
      // Predicated region
      $region41: #{complex_upsample.1} parent=39 // pred_check
        %p1649 = pneg %p168
      $region42: #{complex_upsample.1} parent=39 // pred_check_branch
        %1651 = sbr.rel (%p1649) target = $region44
      $region43: #{complex_upsample.1} parent=39 // pred_region
        %s1652 = smul.u32 4, %s21
      $region44: #{complex_upsample.1} parent=39 // pred_fallthru
        _
    $region40: #{complex_upsample.1} parent=5 // pred_fallthru
      _
    %p1653 = scmp.le.s32.totalorder 2, %s11
    // Predicated region
    $region45: #{complex_upsample.1} parent=5 // pred_check
      %p1654 = pneg %p1653
    $region46: #{complex_upsample.1} parent=5 // pred_check_branch
      %1656 = sbr.rel (%p1654) target = $region48
    $region47: #{complex_upsample.1} parent=5 // pred_region
      %s1657 = ssub.s32 %s11, 2
      // Predicated region
      $region49: #{complex_upsample.1} parent=47 // pred_check
        %p1658 = pneg %p174
      $region50: #{complex_upsample.1} parent=47 // pred_check_branch
        %1660 = sbr.rel (%p1658) target = $region52
      $region51: #{complex_upsample.1} parent=47 // pred_region
        %s1661 = smul.u32 4, %s23
        %p1662 = scmp.lt.s32.totalorder %s22, 1
        %s1663 = scalar_select %p1662, %s22, 1
        %p1664 = scmp.lt.s32.totalorder %s1661, 3
        %s1665 = scalar_select %p1664, %s1661, 3
        %s1666 = smul.addr %s1663, 8
        %s1667 = sadd.s32 %s1665, %s1666
        %s1668 = smul.addr %s1667, 8
        %s1669 = scalar_lea.vmem %s5, %s1668
      $region52: #{complex_upsample.1} parent=47 // pred_fallthru
        _
    $region48: #{complex_upsample.1} parent=5 // pred_fallthru
      _
  $region6: #{complex_upsample.1} parent=0 // loop_footer
    %s15 = sadd.s32 1, %s11
  $region7: #{complex_upsample.1} parent=0 // loop_footer_branch
    %10 = sbr.rel target = $region3
  $region8: #{complex_upsample.1} parent=0 // loop_exit
    _

</llo_original>
